<compile_context>
chip_gen: v5e
topology: v5e:2x2
jax: 0.10.0
libtpu: 0.0.40
codegen_flags: <defaults>
</compile_context>

<pallas_src>
import jax
import jax.numpy as jnp
from jax.experimental import pallas as pl
from jax.experimental.pallas import tpu as pltpu

IN_DIM = 784
H1 = 200
H2 = 200
OUT_DIM = 10

# 128-aligned (lane-dense) padded dims used inside the kernel.
D_PAD = 896     # 7 * 128
H1_PAD = 256
H2_PAD = 256
OUT_PAD = 128


def _round_up(n, m):
    return ((n + m - 1) // m) * m


def mlp_kernel(x_ref, w1_ref, b1_ref, w2_ref, b2_ref, w3_ref, b3_ref, o_ref):
    x = x_ref[...]  # bf16 (tb, 896)

    # Layer 1: Linear(784->200 padded to 896->256) + ReLU (f32 accumulate).
    # TODO(synk): nn.Dropout(0.5) in PyTorch train mode is stochastic; eval-mode
    # semantics (identity) are implemented here.
    h = jnp.dot(x, w1_ref[...], preferred_element_type=jnp.float32) + b1_ref[...]
    h = jnp.maximum(h, 0.0)

    # Layer 2: Linear(200->200 padded to 256->256) + ReLU.
    h = jnp.dot(h.astype(jnp.bfloat16), w2_ref[...],
                preferred_element_type=jnp.float32) + b2_ref[...]
    h = jnp.maximum(h, 0.0)

    # Layer 3: Linear(200->10 padded to 256->128) + ReLU, lane-dense store.
    h = jnp.dot(h.astype(jnp.bfloat16), w3_ref[...],
                preferred_element_type=jnp.float32) + b3_ref[...]
    o_ref[...] = jnp.maximum(h, 0.0).astype(o_ref.dtype)


def mlp_forward(x, params, *, tb=None):
    B, D = x.shape
    assert D == IN_DIM
    w1, b1, w2, b2, w3, b3 = params

    # Pick a 128-multiple batch tile; pad the batch so the grid divides evenly.
    if tb is None:
        b_pad = _round_up(B, 128)
        tb = next(c for c in (1024, 512, 256, 128) if b_pad % c == 0)
    else:
        assert tb % 128 == 0, "batch tile must be a multiple of 128"
        b_pad = _round_up(B, tb)

    # Zero-pad everything to 128-aligned shapes (exact under matmul + ReLU) and
    # cast the MXU operands to bf16; biases stay f32 (added to the f32 accumulator).
    xp = jnp.pad(x, ((0, b_pad - B), (0, D_PAD - D))).astype(jnp.bfloat16)
    w1p = jnp.pad(w1, ((0, D_PAD - IN_DIM), (0, H1_PAD - H1))).astype(jnp.bfloat16)
    b1p = jnp.pad(b1, ((0, 0), (0, H1_PAD - H1)))
    w2p = jnp.pad(w2, ((0, H1_PAD - H1), (0, H2_PAD - H2))).astype(jnp.bfloat16)
    b2p = jnp.pad(b2, ((0, 0), (0, H2_PAD - H2)))
    w3p = jnp.pad(w3, ((0, H2_PAD - H2), (0, OUT_PAD - OUT_DIM))).astype(jnp.bfloat16)
    b3p = jnp.pad(b3, ((0, 0), (0, OUT_PAD - OUT_DIM)))

    flops = 2 * b_pad * (D_PAD * H1_PAD + H1_PAD * H2_PAD + H2_PAD * OUT_PAD)
    bytes_accessed = (
        b_pad * D_PAD * 2                                            # streamed x (bf16)
        + b_pad * OUT_PAD * 4                                        # output (f32)
        + (D_PAD * H1_PAD + H1_PAD * H2_PAD + H2_PAD * OUT_PAD) * 2  # weights (bf16)
        + (H1_PAD + H2_PAD + OUT_PAD) * 4                            # biases (f32)
    )

    out = pl.pallas_call(
        mlp_kernel,
        out_shape=jax.ShapeDtypeStruct((b_pad, OUT_PAD), jnp.float32),
        grid_spec=pltpu.PrefetchScalarGridSpec(
            num_scalar_prefetch=0,
            grid=(b_pad // tb,),
            in_specs=[
                pl.BlockSpec((tb, D_PAD), lambda i: (i, 0)),        # x tile (streamed)
                pl.BlockSpec((D_PAD, H1_PAD), lambda i: (0, 0)),    # W1 (resident)
                pl.BlockSpec((1, H1_PAD), lambda i: (0, 0)),        # b1
                pl.BlockSpec((H1_PAD, H2_PAD), lambda i: (0, 0)),   # W2
                pl.BlockSpec((1, H2_PAD), lambda i: (0, 0)),        # b2
                pl.BlockSpec((H2_PAD, OUT_PAD), lambda i: (0, 0)),  # W3
                pl.BlockSpec((1, OUT_PAD), lambda i: (0, 0)),       # b3
            ],
            out_specs=pl.BlockSpec((tb, OUT_PAD), lambda i: (i, 0)),
        ),
        compiler_params=pltpu.CompilerParams(
            dimension_semantics=("parallel",),
            vmem_limit_bytes=32 * 1024 * 1024,
        ),
        cost_estimate=pl.CostEstimate(
            flops=flops, transcendentals=0, bytes_accessed=bytes_accessed),
    )(xp, w1p, b1p, w2p, b2p, w3p, b3p)

    # Strip the batch / lane padding back to the true output shape.
    return out[:B, :OUT_DIM]


def init_params(key):
    """PyTorch-style Linear init: U(-1/sqrt(fan_in), 1/sqrt(fan_in))."""
    def linear(key, fan_in, fan_out):
        kw, kb = jax.random.split(key)
        bound = 1.0 / jnp.sqrt(fan_in)
        # stored as [in, out] for the kernel (transpose of PyTorch's [out, in])
        w = jax.random.uniform(kw, (fan_in, fan_out), jnp.float32, -bound, bound)
        b = jax.random.uniform(kb, (1, fan_out), jnp.float32, -bound, bound)
        return w, b

    k1, k2, k3 = jax.random.split(key, 3)
    w1, b1 = linear(k1, IN_DIM, H1)
    w2, b2 = linear(k2, H1, H2)
    w3, b3 = linear(k3, H2, OUT_DIM)
    return (w1, b1, w2, b2, w3, b3)


def mlp_reference(x, params):
    """Same numerics as the kernel: bf16 MXU inputs, f32 accumulation."""
    w1, b1, w2, b2, w3, b3 = params
    h = jnp.dot(x.astype(jnp.bfloat16), w1.astype(jnp.bfloat16),
                preferred_element_type=jnp.float32) + b1
    h = jnp.maximum(h, 0.0)
    h = jnp.dot(h.astype(jnp.bfloat16), w2.astype(jnp.bfloat16),
                preferred_element_type=jnp.float32) + b2
    h = jnp.maximum(h, 0.0)
    h = jnp.dot(h.astype(jnp.bfloat16), w3.astype(jnp.bfloat16),
                preferred_element_type=jnp.float32) + b3
    return jnp.maximum(h, 0.0)


if __name__ == "__main__":
    key = jax.random.PRNGKey(0)
    kp, kx = jax.random.split(key)

    params = init_params(kp)
    x = jax.random.normal(kx, (8, IN_DIM), dtype=jnp.float32)  # batch=8, 784 features

    out = mlp_forward(x, params)
    out = jax.block_until_ready(out)

    ref = mlp_reference(x, params)
    assert out.shape == (8, OUT_DIM)
    assert jnp.allclose(out, ref, atol=1e-2, rtol=1e-2), "mismatch vs JAX reference"

    print("KERNEL_OK")
</pallas_src>

<mosaic_0001>
module attributes {stable_mosaic.version = 11 : i64} {
  func.func @mlp_kernel(%arg0: i32, %arg1: memref<128x896xbf16, #tpu.memory_space<vmem>>, %arg2: memref<896x256xbf16, #tpu.memory_space<vmem>>, %arg3: memref<1x256xf32, #tpu.memory_space<vmem>>, %arg4: memref<256x256xbf16, #tpu.memory_space<vmem>>, %arg5: memref<1x256xf32, #tpu.memory_space<vmem>>, %arg6: memref<256x128xbf16, #tpu.memory_space<vmem>>, %arg7: memref<1x128xf32, #tpu.memory_space<vmem>>, %arg8: memref<128x128xf32, #tpu.memory_space<vmem>>) attributes {dimension_semantics = [#tpu.dimension_semantics<parallel>], iteration_bounds = array<i64: 1>, scalar_prefetch = 0 : i64, scratch_operands = 0 : i64, tpu.core_type = #tpu.core_type<tc>, window_params = [{transform_indices = @transform_0, window_bounds = array<i64: 128, 896>}, {pipeline_mode = #tpu.pipeline_mode<synchronous>, transform_indices = @transform_1, window_bounds = array<i64: 896, 256>}, {pipeline_mode = #tpu.pipeline_mode<synchronous>, transform_indices = @transform_2, window_bounds = array<i64: 1, 256>}, {pipeline_mode = #tpu.pipeline_mode<synchronous>, transform_indices = @transform_3, window_bounds = array<i64: 256, 256>}, {pipeline_mode = #tpu.pipeline_mode<synchronous>, transform_indices = @transform_4, window_bounds = array<i64: 1, 256>}, {pipeline_mode = #tpu.pipeline_mode<synchronous>, transform_indices = @transform_5, window_bounds = array<i64: 256, 128>}, {pipeline_mode = #tpu.pipeline_mode<synchronous>, transform_indices = @transform_6, window_bounds = array<i64: 1, 128>}, {transform_indices = @transform_7, window_bounds = array<i64: 128, 128>}]} {
    %c0 = arith.constant 0 : index
    %c0_0 = arith.constant 0 : index
    %0 = vector.load %arg1[%c0, %c0_0] : memref<128x896xbf16, #tpu.memory_space<vmem>>, vector<128x896xbf16>
    %c0_1 = arith.constant 0 : index
    %c0_2 = arith.constant 0 : index
    %1 = vector.load %arg2[%c0_1, %c0_2] : memref<896x256xbf16, #tpu.memory_space<vmem>>, vector<896x256xbf16>
    %cst = arith.constant dense<0.000000e+00> : vector<128x256xf32>
    %2 = tpu.matmul %0, %1, %cst {dimension_numbers = #tpu.dot_dimension_numbers<[1], [0], [0], [1], [0, 0, 1, 1], [], []>} : vector<128x896xbf16>, vector<896x256xbf16>, vector<128x256xf32> -> vector<128x256xf32>
    %c0_3 = arith.constant 0 : index
    %c0_4 = arith.constant 0 : index
    %3 = vector.load %arg3[%c0_3, %c0_4] : memref<1x256xf32, #tpu.memory_space<vmem>>, vector<1x256xf32>
    %4 = vector.broadcast %3 : vector<1x256xf32> to vector<128x256xf32>
    %5 = arith.addf %2, %4 : vector<128x256xf32>
    %cst_5 = arith.constant 0.000000e+00 : f32
    %6 = vector.broadcast %cst_5 : f32 to vector<128x256xf32>
    %7 = arith.maximumf %5, %6 : vector<128x256xf32>
    %8 = arith.truncf %7 : vector<128x256xf32> to vector<128x256xbf16>
    %c0_6 = arith.constant 0 : index
    %c0_7 = arith.constant 0 : index
    %9 = vector.load %arg4[%c0_6, %c0_7] : memref<256x256xbf16, #tpu.memory_space<vmem>>, vector<256x256xbf16>
    %cst_8 = arith.constant dense<0.000000e+00> : vector<128x256xf32>
    %10 = tpu.matmul %8, %9, %cst_8 {dimension_numbers = #tpu.dot_dimension_numbers<[1], [0], [0], [1], [0, 0, 1, 1], [], []>} : vector<128x256xbf16>, vector<256x256xbf16>, vector<128x256xf32> -> vector<128x256xf32>
    %c0_9 = arith.constant 0 : index
    %c0_10 = arith.constant 0 : index
    %11 = vector.load %arg5[%c0_9, %c0_10] : memref<1x256xf32, #tpu.memory_space<vmem>>, vector<1x256xf32>
    %12 = vector.broadcast %11 : vector<1x256xf32> to vector<128x256xf32>
    %13 = arith.addf %10, %12 : vector<128x256xf32>
    %cst_11 = arith.constant 0.000000e+00 : f32
    %14 = vector.broadcast %cst_11 : f32 to vector<128x256xf32>
    %15 = arith.maximumf %13, %14 : vector<128x256xf32>
    %16 = arith.truncf %15 : vector<128x256xf32> to vector<128x256xbf16>
    %c0_12 = arith.constant 0 : index
    %c0_13 = arith.constant 0 : index
    %17 = vector.load %arg6[%c0_12, %c0_13] : memref<256x128xbf16, #tpu.memory_space<vmem>>, vector<256x128xbf16>
    %cst_14 = arith.constant dense<0.000000e+00> : vector<128x128xf32>
    %18 = tpu.matmul %16, %17, %cst_14 {dimension_numbers = #tpu.dot_dimension_numbers<[1], [0], [0], [1], [0, 0, 1, 1], [], []>} : vector<128x256xbf16>, vector<256x128xbf16>, vector<128x128xf32> -> vector<128x128xf32>
    %c0_15 = arith.constant 0 : index
    %c0_16 = arith.constant 0 : index
    %19 = vector.load %arg7[%c0_15, %c0_16] : memref<1x128xf32, #tpu.memory_space<vmem>>, vector<1x128xf32>
    %20 = vector.broadcast %19 : vector<1x128xf32> to vector<128x128xf32>
    %21 = arith.addf %18, %20 : vector<128x128xf32>
    %cst_17 = arith.constant 0.000000e+00 : f32
    %22 = vector.broadcast %cst_17 : f32 to vector<128x128xf32>
    %23 = arith.maximumf %21, %22 : vector<128x128xf32>
    %c0_18 = arith.constant 0 : index
    %c0_19 = arith.constant 0 : index
    %24 = vector.load %arg8[%c0_18, %c0_19] : memref<128x128xf32, #tpu.memory_space<vmem>>, vector<128x128xf32>
    tpu.vector_store %arg8[%c0_18, %c0_19], %23 {strides = array<i32>} : memref<128x128xf32, #tpu.memory_space<vmem>>, vector<128x128xf32>,
    return
  }
  func.func @transform_0(%arg0: i32) -> (i32, i32) {
    %c0_i32 = arith.constant 0 : i32
    %c0_i32_0 = arith.constant 0 : i32
    return %arg0, %c0_i32 : i32, i32
  }
  func.func @transform_1(%arg0: i32) -> (i32, i32) {
    %c0_i32 = arith.constant 0 : i32
    %c0_i32_0 = arith.constant 0 : i32
    %c0_i32_1 = arith.constant 0 : i32
    return %c0_i32, %c0_i32_0 : i32, i32
  }
  func.func @transform_2(%arg0: i32) -> (i32, i32) {
    %c0_i32 = arith.constant 0 : i32
    %c0_i32_0 = arith.constant 0 : i32
    %c0_i32_1 = arith.constant 0 : i32
    return %c0_i32, %c0_i32_0 : i32, i32
  }
  func.func @transform_3(%arg0: i32) -> (i32, i32) {
    %c0_i32 = arith.constant 0 : i32
    %c0_i32_0 = arith.constant 0 : i32
    %c0_i32_1 = arith.constant 0 : i32
    return %c0_i32, %c0_i32_0 : i32, i32
  }
  func.func @transform_4(%arg0: i32) -> (i32, i32) {
    %c0_i32 = arith.constant 0 : i32
    %c0_i32_0 = arith.constant 0 : i32
    %c0_i32_1 = arith.constant 0 : i32
    return %c0_i32, %c0_i32_0 : i32, i32
  }
  func.func @transform_5(%arg0: i32) -> (i32, i32) {
    %c0_i32 = arith.constant 0 : i32
    %c0_i32_0 = arith.constant 0 : i32
    %c0_i32_1 = arith.constant 0 : i32
    return %c0_i32, %c0_i32_0 : i32, i32
  }
  func.func @transform_6(%arg0: i32) -> (i32, i32) {
    %c0_i32 = arith.constant 0 : i32
    %c0_i32_0 = arith.constant 0 : i32
    %c0_i32_1 = arith.constant 0 : i32
    return %c0_i32, %c0_i32_0 : i32, i32
  }
  func.func @transform_7(%arg0: i32) -> (i32, i32) {
    %c0_i32 = arith.constant 0 : i32
    %c0_i32_0 = arith.constant 0 : i32
    return %arg0, %c0_i32 : i32, i32
  }
}

</mosaic_0001>

<llo_original>
// kernel: tpu_custom_call.1
$region0: #{tpu_custom_call.1}
  #allocation0 [shape = 'u32[]', space=smem, size = 0x4, offset = 0x4, fixed_abs, tag = 'smem constant byte address 0x4 - core index']
  #allocation1 [shape = 'u32[72,128]{1,0:T(1,128)}', space=vmem, size = 0x9000, scoped, tag = 'internal scratch']
  %s0 = inlined_call_operand.hbm [shape: bf16[128,896], index: 0, kind: input, shape index: {}]
  %s1 = inlined_call_operand.hbm [shape: bf16[896,256], index: 1, kind: input, shape index: {}]
  %s2 = inlined_call_operand.hbm [shape: f32[1,256], index: 2, kind: input, shape index: {}]
  %s3 = inlined_call_operand.hbm [shape: bf16[256,256], index: 3, kind: input, shape index: {}]
  %s4 = inlined_call_operand.vmem [shape: f32[1,256], index: 4, kind: input, shape index: {}]
  %s5 = inlined_call_operand.hbm [shape: bf16[256,128], index: 5, kind: input, shape index: {}]
  %s6 = inlined_call_operand.vmem [shape: f32[1,128], index: 6, kind: input, shape index: {}]
  %s7 = inlined_call_operand.hbm [shape: f32[128,128], index: 7, kind: output, shape index: {}]
  %s8 = sld [smem:[#allocation0]]
  $region58: #{tpu_custom_call.1} parent=0
    _
  %s10 = ssub.s32 1, %s8
  %s11 = scalar_select 0, %s10, %s8
  $region1: #{tpu_custom_call.1} parent=0
    #allocation2 [shape = 'u8[229376]{0}', space=vmem, size = 0x38000, scoped, tag = 'input window, operand 0, single buffered']
    #allocation3 [shape = 's32[1]{0}', space=sflag, size = 0x4, scoped, tag = 'scoped memory for tpu_custom_call.1']
    #allocation4 [shape = 's32[1]{0}', space=sflag, size = 0x4, scoped, tag = 'scoped memory for tpu_custom_call.1']
    #allocation5 [shape = 'u8[458752]{0}', space=vmem, size = 0x70000, scoped, tag = 'input window, operand 1, single buffered']
    #allocation6 [shape = 's32[1]{0}', space=sflag, size = 0x4, scoped, tag = 'scoped memory for tpu_custom_call.1']
    #allocation7 [shape = 'u8[1024]{0}', space=vmem, size = 0x400, scoped, tag = 'input window, operand 2, single buffered']
    #allocation8 [shape = 'u8[131072]{0}', space=vmem, size = 0x20000, scoped, tag = 'input window, operand 3, single buffered']
    #allocation9 [shape = 's32[1]{0}', space=sflag, size = 0x4, scoped, tag = 'scoped memory for tpu_custom_call.1']
    #allocation10 [shape = 'u8[65536]{0}', space=vmem, size = 0x10000, scoped, tag = 'input window, operand 5, single buffered']
    #allocation11 [shape = 'u8[65536]{0}', space=vmem, size = 0x10000, scoped, tag = 'output window, operand 0, single buffered']
    %12 = vsyncpa [#allocation3], 0
    %13 = vsyncpa [#allocation6], 0
    %14 = vsyncpa [#allocation9], 0
    %15 = vsyncpa [#allocation4], 0
    // Predicated region
    $region2: #{tpu_custom_call.1} parent=1 // pred_check
      _
    $region3: #{tpu_custom_call.1} parent=1 // pred_check_branch
      %17 = sbr.rel (0) target = $region5
    $region4: #{tpu_custom_call.1} parent=1 // pred_region
      %19 = vsyncadd [#allocation3], 0
      %s20 = sshll.u32 %s0, 4
      %s21 = int_to_ptr.hbm [resolvable:$true] %s20
      %s22 = sshll.u32 [#allocation2], 4
      %s23 = int_to_ptr.vmem [resolvable:$true] %s22
      %28 = dma.hbm_to_vmem [thread:$0]  %s21, 7168, %s23, [#allocation3], 448, 448, 28
    $region5: #{tpu_custom_call.1} parent=1 // pred_fallthru
      _
    // Predicated region
    $region6: #{tpu_custom_call.1} parent=1 // pred_check
      _
    $region7: #{tpu_custom_call.1} parent=1 // pred_check_branch
      %30 = sbr.rel (0) target = $region9
    $region8: #{tpu_custom_call.1} parent=1 // pred_region
      %32 = vsyncadd [#allocation6], 0
      %s33 = sshll.u32 %s1, 4
      %s34 = int_to_ptr.hbm [resolvable:$true] %s33
      %s35 = sshll.u32 [#allocation5], 4
      %s36 = int_to_ptr.vmem [resolvable:$true] %s35
      %41 = dma.hbm_to_vmem [thread:$0]  %s34, 14336, %s36, [#allocation6], 128, 128, 8
    $region9: #{tpu_custom_call.1} parent=1 // pred_fallthru
      _
    // Predicated region
    $region10: #{tpu_custom_call.1} parent=1 // pred_check
      _
    $region11: #{tpu_custom_call.1} parent=1 // pred_check_branch
      %43 = sbr.rel (0) target = $region13
    $region12: #{tpu_custom_call.1} parent=1 // pred_region
      %45 = vsyncadd [#allocation6], 0
      %s47 = sshll.u32 %s2, 4
      %s48 = int_to_ptr.hbm [resolvable:$true] %s47
      %s49 = sshll.u32 [#allocation7], 4
      %s50 = int_to_ptr.vmem [resolvable:$true] %s49
      %52 = dma.hbm_to_vmem [thread:$0]  %s48, 32, %s50, [#allocation6]
    $region13: #{tpu_custom_call.1} parent=1 // pred_fallthru
      _
    // Predicated region
    $region14: #{tpu_custom_call.1} parent=1 // pred_check
      _
    $region15: #{tpu_custom_call.1} parent=1 // pred_check_branch
      %54 = sbr.rel (0) target = $region17
    $region16: #{tpu_custom_call.1} parent=1 // pred_region
      %56 = vsyncadd [#allocation9], 0
      %s57 = sshll.u32 %s3, 4
      %s58 = int_to_ptr.hbm [resolvable:$true] %s57
      %s59 = sshll.u32 [#allocation8], 4
      %s60 = int_to_ptr.vmem [resolvable:$true] %s59
      %65 = dma.hbm_to_vmem [thread:$0]  %s58, 4096, %s60, [#allocation9], 128, 128, 8
    $region17: #{tpu_custom_call.1} parent=1 // pred_fallthru
      _
    // Predicated region
    $region18: #{tpu_custom_call.1} parent=1 // pred_check
      _
    $region19: #{tpu_custom_call.1} parent=1 // pred_check_branch
      %67 = sbr.rel (0) target = $region21
    $region20: #{tpu_custom_call.1} parent=1 // pred_region
      _
    $region21: #{tpu_custom_call.1} parent=1 // pred_fallthru
      _
    // Predicated region
    $region22: #{tpu_custom_call.1} parent=1 // pred_check
      _
    $region23: #{tpu_custom_call.1} parent=1 // pred_check_branch
      %69 = sbr.rel (0) target = $region25
    $region24: #{tpu_custom_call.1} parent=1 // pred_region
      %71 = vsyncadd [#allocation9], 0
      %s72 = sshll.u32 %s5, 4
      %s73 = int_to_ptr.hbm [resolvable:$true] %s72
      %s74 = sshll.u32 [#allocation10], 4
      %s75 = int_to_ptr.vmem [resolvable:$true] %s74
      %80 = dma.hbm_to_vmem [thread:$0]  %s73, 2048, %s75, [#allocation9], 64, 64, 4
    $region25: #{tpu_custom_call.1} parent=1 // pred_fallthru
      _
    // Predicated region
    $region26: #{tpu_custom_call.1} parent=1 // pred_check
      _
    $region27: #{tpu_custom_call.1} parent=1 // pred_check_branch
      %82 = sbr.rel (0) target = $region29
    $region28: #{tpu_custom_call.1} parent=1 // pred_region
      _
    $region29: #{tpu_custom_call.1} parent=1 // pred_fallthru
      _
    // Predicated region
    $region30: #{tpu_custom_call.1} parent=1 // pred_check
      _
    $region31: #{tpu_custom_call.1} parent=1 // pred_check_branch
      %84 = sbr.rel (0) target = $region33
    $region32: #{tpu_custom_call.1} parent=1 // pred_region
      %86 = dma.done [#allocation3], 7168
    $region33: #{tpu_custom_call.1} parent=1 // pred_fallthru
      _
    // Predicated region
    $region34: #{tpu_custom_call.1} parent=1 // pred_check
      _
    $region35: #{tpu_custom_call.1} parent=1 // pred_check_branch
      %88 = sbr.rel (0) target = $region37
    $region36: #{tpu_custom_call.1} parent=1 // pred_region
      %90 = dma.done [#allocation6], 14336
    $region37: #{tpu_custom_call.1} parent=1 // pred_fallthru
      _
    // Predicated region
    $region38: #{tpu_custom_call.1} parent=1 // pred_check
      _
    $region39: #{tpu_custom_call.1} parent=1 // pred_check_branch
      %92 = sbr.rel (0) target = $region41
    $region40: #{tpu_custom_call.1} parent=1 // pred_region
      %94 = dma.done [#allocation6], 32
    $region41: #{tpu_custom_call.1} parent=1 // pred_fallthru
      _
    // Predicated region
    $region42: #{tpu_custom_call.1} parent=1 // pred_check
      _
    $region43: #{tpu_custom_call.1} parent=1 // pred_check_branch
      %96 = sbr.rel (0) target = $region45
    $region44: #{tpu_custom_call.1} parent=1 // pred_region
      %98 = dma.done [#allocation9], 4096
    $region45: #{tpu_custom_call.1} parent=1 // pred_fallthru
      _
    // Predicated region
    $region46: #{tpu_custom_call.1} parent=1 // pred_check
      _
    $region47: #{tpu_custom_call.1} parent=1 // pred_check_branch
      %100 = sbr.rel (0) target = $region49
    $region48: #{tpu_custom_call.1} parent=1 // pred_region
      %102 = dma.done [#allocation9], 2048
    $region49: #{tpu_custom_call.1} parent=1 // pred_fallthru
      _
    %v103 = vld [vmem:[#allocation2] sm:$0xff]
    %v104 = vld [vmem:[#allocation2 + $0x8] sm:$0xff]
    %v105 = vld [vmem:[#allocation2 + $0x10] sm:$0xff]
    %v106 = vld [vmem:[#allocation2 + $0x18] sm:$0xf]
    %v107 = vld [vmem:[#allocation2 + $0x1c] sm:$0xff]
    %v108 = vld [vmem:[#allocation2 + $0x24] sm:$0xff]
    %v109 = vld [vmem:[#allocation2 + $0x2c] sm:$0xff]
    %v110 = vld [vmem:[#allocation2 + $0x34] sm:$0xf]
    %v111 = vld [vmem:[#allocation2 + $0x38] sm:$0xff]
    %v112 = vld [vmem:[#allocation2 + $0x40] sm:$0xff]
    %v113 = vld [vmem:[#allocation2 + $0x48] sm:$0xff]
    %v114 = vld [vmem:[#allocation2 + $0x50] sm:$0xf]
    %v115 = vld [vmem:[#allocation2 + $0x54] sm:$0xff]
    %v116 = vld [vmem:[#allocation2 + $0x5c] sm:$0xff]
    %v117 = vld [vmem:[#allocation2 + $0x64] sm:$0xff]
    %v118 = vld [vmem:[#allocation2 + $0x6c] sm:$0xf]
    %v119 = vld [vmem:[#allocation2 + $0x70] sm:$0xff]
    %v120 = vld [vmem:[#allocation2 + $0x78] sm:$0xff]
    %v121 = vld [vmem:[#allocation2 + $0x80] sm:$0xff]
    %v122 = vld [vmem:[#allocation2 + $0x88] sm:$0xf]
    %v123 = vld [vmem:[#allocation2 + $0x8c] sm:$0xff]
    %v124 = vld [vmem:[#allocation2 + $0x94] sm:$0xff]
    %v125 = vld [vmem:[#allocation2 + $0x9c] sm:$0xff]
    %v126 = vld [vmem:[#allocation2 + $0xa4] sm:$0xf]
    %v127 = vld [vmem:[#allocation2 + $0xa8] sm:$0xff]
    %v128 = vld [vmem:[#allocation2 + $0xb0] sm:$0xff]
    %v129 = vld [vmem:[#allocation2 + $0xb8] sm:$0xff]
    %v130 = vld [vmem:[#allocation2 + $0xc0] sm:$0xf]
    %v131 = vld [vmem:[#allocation2 + $0xc4] sm:$0xff]
    %v132 = vld [vmem:[#allocation2 + $0xcc] sm:$0xff]
    %v133 = vld [vmem:[#allocation2 + $0xd4] sm:$0xff]
    %v134 = vld [vmem:[#allocation2 + $0xdc] sm:$0xf]
    %v135 = vld [vmem:[#allocation2 + $0xe0] sm:$0xff]
    %v136 = vld [vmem:[#allocation2 + $0xe8] sm:$0xff]
    %v137 = vld [vmem:[#allocation2 + $0xf0] sm:$0xff]
    %v138 = vld [vmem:[#allocation2 + $0xf8] sm:$0xf]
    %v139 = vld [vmem:[#allocation2 + $0xfc] sm:$0xff]
    %v140 = vld [vmem:[#allocation2 + $0x104] sm:$0xff]
    %v141 = vld [vmem:[#allocation2 + $0x10c] sm:$0xff]
    %v142 = vld [vmem:[#allocation2 + $0x114] sm:$0xf]
    %v143 = vld [vmem:[#allocation2 + $0x118] sm:$0xff]
    %v144 = vld [vmem:[#allocation2 + $0x120] sm:$0xff]
    %v145 = vld [vmem:[#allocation2 + $0x128] sm:$0xff]
    %v146 = vld [vmem:[#allocation2 + $0x130] sm:$0xf]
    %v147 = vld [vmem:[#allocation2 + $0x134] sm:$0xff]
    %v148 = vld [vmem:[#allocation2 + $0x13c] sm:$0xff]
    %v149 = vld [vmem:[#allocation2 + $0x144] sm:$0xff]
    %v150 = vld [vmem:[#allocation2 + $0x14c] sm:$0xf]
    %v151 = vld [vmem:[#allocation2 + $0x150] sm:$0xff]
    %v152 = vld [vmem:[#allocation2 + $0x158] sm:$0xff]
    %v153 = vld [vmem:[#allocation2 + $0x160] sm:$0xff]
    %v154 = vld [vmem:[#allocation2 + $0x168] sm:$0xf]
    %v155 = vld [vmem:[#allocation2 + $0x16c] sm:$0xff]
    %v156 = vld [vmem:[#allocation2 + $0x174] sm:$0xff]
    %v157 = vld [vmem:[#allocation2 + $0x17c] sm:$0xff]
    %v158 = vld [vmem:[#allocation2 + $0x184] sm:$0xf]
    %v159 = vld [vmem:[#allocation2 + $0x188] sm:$0xff]
    %v160 = vld [vmem:[#allocation2 + $0x190] sm:$0xff]
    %v161 = vld [vmem:[#allocation2 + $0x198] sm:$0xff]
    %v162 = vld [vmem:[#allocation2 + $0x1a0] sm:$0xf]
    %v163 = vld [vmem:[#allocation2 + $0x1a4] sm:$0xff]
    %v164 = vld [vmem:[#allocation2 + $0x1ac] sm:$0xff]
    %v165 = vld [vmem:[#allocation2 + $0x1b4] sm:$0xff]
    %v166 = vld [vmem:[#allocation2 + $0x1bc] sm:$0xf]
    %v167 = vld [vmem:[#allocation5] sm:$0xff]
    %v168 = vld [vmem:[#allocation5 + $0x8] sm:$0xff]
    %v169 = vld [vmem:[#allocation5 + $0x10] sm:$0xff]
    %v170 = vld [vmem:[#allocation5 + $0x18] sm:$0xff]
    %v171 = vld [vmem:[#allocation5 + $0x20] sm:$0xff]
    %v172 = vld [vmem:[#allocation5 + $0x28] sm:$0xff]
    %v173 = vld [vmem:[#allocation5 + $0x30] sm:$0xff]
    %v174 = vld [vmem:[#allocation5 + $0x38] sm:$0xff]
    %v175 = vld [vmem:[#allocation5 + $0x40] sm:$0xff]
    %v176 = vld [vmem:[#allocation5 + $0x48] sm:$0xff]
    %v177 = vld [vmem:[#allocation5 + $0x50] sm:$0xff]
    %v178 = vld [vmem:[#allocation5 + $0x58] sm:$0xff]
    %v179 = vld [vmem:[#allocation5 + $0x60] sm:$0xff]
    %v180 = vld [vmem:[#allocation5 + $0x68] sm:$0xff]
    %v181 = vld [vmem:[#allocation5 + $0x70] sm:$0xff]
    %v182 = vld [vmem:[#allocation5 + $0x78] sm:$0xff]
    %v183 = vld [vmem:[#allocation5 + $0x80] sm:$0xff]
    %v184 = vld [vmem:[#allocation5 + $0x88] sm:$0xff]
    %v185 = vld [vmem:[#allocation5 + $0x90] sm:$0xff]
    %v186 = vld [vmem:[#allocation5 + $0x98] sm:$0xff]
    %v187 = vld [vmem:[#allocation5 + $0xa0] sm:$0xff]
    %v188 = vld [vmem:[#allocation5 + $0xa8] sm:$0xff]
    %v189 = vld [vmem:[#allocation5 + $0xb0] sm:$0xff]
    %v190 = vld [vmem:[#allocation5 + $0xb8] sm:$0xff]
    %v191 = vld [vmem:[#allocation5 + $0xc0] sm:$0xff]
    %v192 = vld [vmem:[#allocation5 + $0xc8] sm:$0xff]
    %v193 = vld [vmem:[#allocation5 + $0xd0] sm:$0xff]
    %v194 = vld [vmem:[#allocation5 + $0xd8] sm:$0xff]
    %v195 = vld [vmem:[#allocation5 + $0xe0] sm:$0xff]
    %v196 = vld [vmem:[#allocation5 + $0xe8] sm:$0xff]
    %v197 = vld [vmem:[#allocation5 + $0xf0] sm:$0xff]
    %v198 = vld [vmem:[#allocation5 + $0xf8] sm:$0xff]
    %v199 = vld [vmem:[#allocation5 + $0x100] sm:$0xff]
    %v200 = vld [vmem:[#allocation5 + $0x108] sm:$0xff]
    %v201 = vld [vmem:[#allocation5 + $0x110] sm:$0xff]
    %v202 = vld [vmem:[#allocation5 + $0x118] sm:$0xff]
    %v203 = vld [vmem:[#allocation5 + $0x120] sm:$0xff]
    %v204 = vld [vmem:[#allocation5 + $0x128] sm:$0xff]
    %v205 = vld [vmem:[#allocation5 + $0x130] sm:$0xff]
    %v206 = vld [vmem:[#allocation5 + $0x138] sm:$0xff]
    %v207 = vld [vmem:[#allocation5 + $0x140] sm:$0xff]
    %v208 = vld [vmem:[#allocation5 + $0x148] sm:$0xff]
    %v209 = vld [vmem:[#allocation5 + $0x150] sm:$0xff]
    %v210 = vld [vmem:[#allocation5 + $0x158] sm:$0xff]
    %v211 = vld [vmem:[#allocation5 + $0x160] sm:$0xff]
    %v212 = vld [vmem:[#allocation5 + $0x168] sm:$0xff]
    %v213 = vld [vmem:[#allocation5 + $0x170] sm:$0xff]
    %v214 = vld [vmem:[#allocation5 + $0x178] sm:$0xff]
    %v215 = vld [vmem:[#allocation5 + $0x180] sm:$0xff]
    %v216 = vld [vmem:[#allocation5 + $0x188] sm:$0xff]
    %v217 = vld [vmem:[#allocation5 + $0x190] sm:$0xff]
    %v218 = vld [vmem:[#allocation5 + $0x198] sm:$0xff]
    %v219 = vld [vmem:[#allocation5 + $0x1a0] sm:$0xff]
    %v220 = vld [vmem:[#allocation5 + $0x1a8] sm:$0xff]
    %v221 = vld [vmem:[#allocation5 + $0x1b0] sm:$0xff]
    %v222 = vld [vmem:[#allocation5 + $0x1b8] sm:$0xff]
    %v223 = vld [vmem:[#allocation5 + $0x1c0] sm:$0xff]
    %v224 = vld [vmem:[#allocation5 + $0x1c8] sm:$0xff]
    %v225 = vld [vmem:[#allocation5 + $0x1d0] sm:$0xff]
    %v226 = vld [vmem:[#allocation5 + $0x1d8] sm:$0xff]
    %v227 = vld [vmem:[#allocation5 + $0x1e0] sm:$0xff]
    %v228 = vld [vmem:[#allocation5 + $0x1e8] sm:$0xff]
    %v229 = vld [vmem:[#allocation5 + $0x1f0] sm:$0xff]
    %v230 = vld [vmem:[#allocation5 + $0x1f8] sm:$0xff]
    %v231 = vld [vmem:[#allocation5 + $0x200] sm:$0xff]
    %v232 = vld [vmem:[#allocation5 + $0x208] sm:$0xff]
    %v233 = vld [vmem:[#allocation5 + $0x210] sm:$0xff]
    %v234 = vld [vmem:[#allocation5 + $0x218] sm:$0xff]
    %v235 = vld [vmem:[#allocation5 + $0x220] sm:$0xff]
    %v236 = vld [vmem:[#allocation5 + $0x228] sm:$0xff]
    %v237 = vld [vmem:[#allocation5 + $0x230] sm:$0xff]
    %v238 = vld [vmem:[#allocation5 + $0x238] sm:$0xff]
    %v239 = vld [vmem:[#allocation5 + $0x240] sm:$0xff]
    %v240 = vld [vmem:[#allocation5 + $0x248] sm:$0xff]
    %v241 = vld [vmem:[#allocation5 + $0x250] sm:$0xff]
    %v242 = vld [vmem:[#allocation5 + $0x258] sm:$0xff]
    %v243 = vld [vmem:[#allocation5 + $0x260] sm:$0xff]
    %v244 = vld [vmem:[#allocation5 + $0x268] sm:$0xff]
    %v245 = vld [vmem:[#allocation5 + $0x270] sm:$0xff]
    %v246 = vld [vmem:[#allocation5 + $0x278] sm:$0xff]
    %v247 = vld [vmem:[#allocation5 + $0x280] sm:$0xff]
    %v248 = vld [vmem:[#allocation5 + $0x288] sm:$0xff]
    %v249 = vld [vmem:[#allocation5 + $0x290] sm:$0xff]
    %v250 = vld [vmem:[#allocation5 + $0x298] sm:$0xff]
    %v251 = vld [vmem:[#allocation5 + $0x2a0] sm:$0xff]
    %v252 = vld [vmem:[#allocation5 + $0x2a8] sm:$0xff]
    %v253 = vld [vmem:[#allocation5 + $0x2b0] sm:$0xff]
    %v254 = vld [vmem:[#allocation5 + $0x2b8] sm:$0xff]
    %v255 = vld [vmem:[#allocation5 + $0x2c0] sm:$0xff]
    %v256 = vld [vmem:[#allocation5 + $0x2c8] sm:$0xff]
    %v257 = vld [vmem:[#allocation5 + $0x2d0] sm:$0xff]
    %v258 = vld [vmem:[#allocation5 + $0x2d8] sm:$0xff]
    %v259 = vld [vmem:[#allocation5 + $0x2e0] sm:$0xff]
    %v260 = vld [vmem:[#allocation5 + $0x2e8] sm:$0xff]
    %v261 = vld [vmem:[#allocation5 + $0x2f0] sm:$0xff]
    %v262 = vld [vmem:[#allocation5 + $0x2f8] sm:$0xff]
    %v263 = vld [vmem:[#allocation5 + $0x300] sm:$0xff]
    %v264 = vld [vmem:[#allocation5 + $0x308] sm:$0xff]
    %v265 = vld [vmem:[#allocation5 + $0x310] sm:$0xff]
    %v266 = vld [vmem:[#allocation5 + $0x318] sm:$0xff]
    %v267 = vld [vmem:[#allocation5 + $0x320] sm:$0xff]
    %v268 = vld [vmem:[#allocation5 + $0x328] sm:$0xff]
    %v269 = vld [vmem:[#allocation5 + $0x330] sm:$0xff]
    %v270 = vld [vmem:[#allocation5 + $0x338] sm:$0xff]
    %v271 = vld [vmem:[#allocation5 + $0x340] sm:$0xff]
    %v272 = vld [vmem:[#allocation5 + $0x348] sm:$0xff]
    %v273 = vld [vmem:[#allocation5 + $0x350] sm:$0xff]
    %v274 = vld [vmem:[#allocation5 + $0x358] sm:$0xff]
    %v275 = vld [vmem:[#allocation5 + $0x360] sm:$0xff]
    %v276 = vld [vmem:[#allocation5 + $0x368] sm:$0xff]
    %v277 = vld [vmem:[#allocation5 + $0x370] sm:$0xff]
    %v278 = vld [vmem:[#allocation5 + $0x378] sm:$0xff]
    %v279 = vld [vmem:[#allocation7] sm:$0x3]
    %v281 = vperm.slane %v279, 0
    %v282 = vperm.slane %v279, 1
    %v349 = vunpack.c.l.b16 %v103
    %v350 = vunpack.c.h.b16 %v103
    %v351 = vunpack.c.l.b16 %v104
    %v352 = vunpack.c.h.b16 %v104
    %v353 = vunpack.c.l.b16 %v105
    %v354 = vunpack.c.h.b16 %v105
    %v355 = vunpack.c.l.b16 %v106
    %v356 = vunpack.c.l.b16 %v107
    %v357 = vunpack.c.h.b16 %v107
    %v358 = vunpack.c.l.b16 %v108
    %v359 = vunpack.c.h.b16 %v108
    %v360 = vunpack.c.l.b16 %v109
    %v361 = vunpack.c.h.b16 %v109
    %v362 = vunpack.c.l.b16 %v110
    %v363 = vunpack.c.l.b16 %v111
    %v364 = vunpack.c.h.b16 %v111
    %v365 = vunpack.c.l.b16 %v112
    %v366 = vunpack.c.h.b16 %v112
    %v367 = vunpack.c.l.b16 %v113
    %v368 = vunpack.c.h.b16 %v113
    %v369 = vunpack.c.l.b16 %v114
    %v370 = vunpack.c.l.b16 %v115
    %v371 = vunpack.c.h.b16 %v115
    %v372 = vunpack.c.l.b16 %v116
    %v373 = vunpack.c.h.b16 %v116
    %v374 = vunpack.c.l.b16 %v117
    %v375 = vunpack.c.h.b16 %v117
    %v376 = vunpack.c.l.b16 %v118
    %v377 = vunpack.c.l.b16 %v119
    %v378 = vunpack.c.h.b16 %v119
    %v379 = vunpack.c.l.b16 %v120
    %v380 = vunpack.c.h.b16 %v120
    %v381 = vunpack.c.l.b16 %v121
    %v382 = vunpack.c.h.b16 %v121
    %v383 = vunpack.c.l.b16 %v122
    %v384 = vunpack.c.l.b16 %v123
    %v385 = vunpack.c.h.b16 %v123
    %v386 = vunpack.c.l.b16 %v124
    %v387 = vunpack.c.h.b16 %v124
    %v388 = vunpack.c.l.b16 %v125
    %v389 = vunpack.c.h.b16 %v125
    %v390 = vunpack.c.l.b16 %v126
    %v391 = vunpack.c.l.b16 %v127
    %v392 = vunpack.c.h.b16 %v127
    %v393 = vunpack.c.l.b16 %v128
    %v394 = vunpack.c.h.b16 %v128
    %v395 = vunpack.c.l.b16 %v129
    %v396 = vunpack.c.h.b16 %v129
    %v397 = vunpack.c.l.b16 %v130
    %v398 = vunpack.c.l.b16 %v131
    %v399 = vunpack.c.h.b16 %v131
    %v400 = vunpack.c.l.b16 %v132
    %v401 = vunpack.c.h.b16 %v132
    %v402 = vunpack.c.l.b16 %v133
    %v403 = vunpack.c.h.b16 %v133
    %v404 = vunpack.c.l.b16 %v134
    %v405 = vunpack.c.l.b16 %v135
    %v406 = vunpack.c.h.b16 %v135
    %v407 = vunpack.c.l.b16 %v136
    %v408 = vunpack.c.h.b16 %v136
    %v409 = vunpack.c.l.b16 %v137
    %v410 = vunpack.c.h.b16 %v137
    %v411 = vunpack.c.l.b16 %v138
    %v412 = vunpack.c.l.b16 %v139
    %v413 = vunpack.c.h.b16 %v139
    %v414 = vunpack.c.l.b16 %v140
    %v415 = vunpack.c.h.b16 %v140
    %v416 = vunpack.c.l.b16 %v141
    %v417 = vunpack.c.h.b16 %v141
    %v418 = vunpack.c.l.b16 %v142
    %v419 = vunpack.c.l.b16 %v143
    %v420 = vunpack.c.h.b16 %v143
    %v421 = vunpack.c.l.b16 %v144
    %v422 = vunpack.c.h.b16 %v144
    %v423 = vunpack.c.l.b16 %v145
    %v424 = vunpack.c.h.b16 %v145
    %v425 = vunpack.c.l.b16 %v146
    %v426 = vunpack.c.l.b16 %v147
    %v427 = vunpack.c.h.b16 %v147
    %v428 = vunpack.c.l.b16 %v148
    %v429 = vunpack.c.h.b16 %v148
    %v430 = vunpack.c.l.b16 %v149
    %v431 = vunpack.c.h.b16 %v149
    %v432 = vunpack.c.l.b16 %v150
    %v433 = vunpack.c.l.b16 %v151
    %v434 = vunpack.c.h.b16 %v151
    %v435 = vunpack.c.l.b16 %v152
    %v436 = vunpack.c.h.b16 %v152
    %v437 = vunpack.c.l.b16 %v153
    %v438 = vunpack.c.h.b16 %v153
    %v439 = vunpack.c.l.b16 %v154
    %v440 = vunpack.c.l.b16 %v155
    %v441 = vunpack.c.h.b16 %v155
    %v442 = vunpack.c.l.b16 %v156
    %v443 = vunpack.c.h.b16 %v156
    %v444 = vunpack.c.l.b16 %v157
    %v445 = vunpack.c.h.b16 %v157
    %v446 = vunpack.c.l.b16 %v158
    %v447 = vunpack.c.l.b16 %v159
    %v448 = vunpack.c.h.b16 %v159
    %v449 = vunpack.c.l.b16 %v160
    %v450 = vunpack.c.h.b16 %v160
    %v451 = vunpack.c.l.b16 %v161
    %v452 = vunpack.c.h.b16 %v161
    %v453 = vunpack.c.l.b16 %v162
    %v454 = vunpack.c.l.b16 %v163
    %v455 = vunpack.c.h.b16 %v163
    %v456 = vunpack.c.l.b16 %v164
    %v457 = vunpack.c.h.b16 %v164
    %v458 = vunpack.c.l.b16 %v165
    %v459 = vunpack.c.h.b16 %v165
    %v460 = vunpack.c.l.b16 %v166
    %v461 = vpack.c.b16 %v356, %v349
    %v462 = vpack.c.b16 %v357, %v350
    %v463 = vpack.c.b16 %v358, %v351
    %v464 = vpack.c.b16 %v359, %v352
    %v465 = vpack.c.b16 %v360, %v353
    %v466 = vpack.c.b16 %v361, %v354
    %v467 = vpack.c.b16 %v362, %v355
    %v468 = vpack.c.b16 %v370, %v363
    %v469 = vpack.c.b16 %v371, %v364
    %v470 = vpack.c.b16 %v372, %v365
    %v471 = vpack.c.b16 %v373, %v366
    %v472 = vpack.c.b16 %v374, %v367
    %v473 = vpack.c.b16 %v375, %v368
    %v474 = vpack.c.b16 %v376, %v369
    %v475 = vpack.c.b16 %v384, %v377
    %v476 = vpack.c.b16 %v385, %v378
    %v477 = vpack.c.b16 %v386, %v379
    %v478 = vpack.c.b16 %v387, %v380
    %v479 = vpack.c.b16 %v388, %v381
    %v480 = vpack.c.b16 %v389, %v382
    %v481 = vpack.c.b16 %v390, %v383
    %v482 = vpack.c.b16 %v398, %v391
    %v483 = vpack.c.b16 %v399, %v392
    %v484 = vpack.c.b16 %v400, %v393
    %v485 = vpack.c.b16 %v401, %v394
    %v486 = vpack.c.b16 %v402, %v395
    %v487 = vpack.c.b16 %v403, %v396
    %v488 = vpack.c.b16 %v404, %v397
    %v489 = vpack.c.b16 %v412, %v405
    %v490 = vpack.c.b16 %v413, %v406
    %v491 = vpack.c.b16 %v414, %v407
    %v492 = vpack.c.b16 %v415, %v408
    %v493 = vpack.c.b16 %v416, %v409
    %v494 = vpack.c.b16 %v417, %v410
    %v495 = vpack.c.b16 %v418, %v411
    %v496 = vpack.c.b16 %v426, %v419
    %v497 = vpack.c.b16 %v427, %v420
    %v498 = vpack.c.b16 %v428, %v421
    %v499 = vpack.c.b16 %v429, %v422
    %v500 = vpack.c.b16 %v430, %v423
    %v501 = vpack.c.b16 %v431, %v424
    %v502 = vpack.c.b16 %v432, %v425
    %v503 = vpack.c.b16 %v440, %v433
    %v504 = vpack.c.b16 %v441, %v434
    %v505 = vpack.c.b16 %v442, %v435
    %v506 = vpack.c.b16 %v443, %v436
    %v507 = vpack.c.b16 %v444, %v437
    %v508 = vpack.c.b16 %v445, %v438
    %v509 = vpack.c.b16 %v446, %v439
    %v510 = vpack.c.b16 %v454, %v447
    %v511 = vpack.c.b16 %v455, %v448
    %v512 = vpack.c.b16 %v456, %v449
    %v513 = vpack.c.b16 %v457, %v450
    %v514 = vpack.c.b16 %v458, %v451
    %v515 = vpack.c.b16 %v459, %v452
    %v516 = vpack.c.b16 %v460, %v453
    %v685 = vunpack.c.l.b16 %v167
    %v686 = vunpack.c.h.b16 %v167
    %v687 = vunpack.c.l.b16 %v168
    %v688 = vunpack.c.h.b16 %v168
    %v689 = vunpack.c.l.b16 %v169
    %v690 = vunpack.c.h.b16 %v169
    %v691 = vunpack.c.l.b16 %v170
    %v692 = vunpack.c.h.b16 %v170
    %v693 = vunpack.c.l.b16 %v171
    %v694 = vunpack.c.h.b16 %v171
    %v695 = vunpack.c.l.b16 %v172
    %v696 = vunpack.c.h.b16 %v172
    %v697 = vunpack.c.l.b16 %v173
    %v698 = vunpack.c.h.b16 %v173
    %v699 = vunpack.c.l.b16 %v174
    %v700 = vunpack.c.h.b16 %v174
    %v701 = vunpack.c.l.b16 %v175
    %v702 = vunpack.c.h.b16 %v175
    %v703 = vunpack.c.l.b16 %v176
    %v704 = vunpack.c.h.b16 %v176
    %v705 = vunpack.c.l.b16 %v177
    %v706 = vunpack.c.h.b16 %v177
    %v707 = vunpack.c.l.b16 %v178
    %v708 = vunpack.c.h.b16 %v178
    %v709 = vunpack.c.l.b16 %v179
    %v710 = vunpack.c.h.b16 %v179
    %v711 = vunpack.c.l.b16 %v180
    %v712 = vunpack.c.h.b16 %v180
    %v713 = vunpack.c.l.b16 %v181
    %v714 = vunpack.c.h.b16 %v181
    %v715 = vunpack.c.l.b16 %v182
    %v716 = vunpack.c.h.b16 %v182
    %v717 = vunpack.c.l.b16 %v183
    %v718 = vunpack.c.h.b16 %v183
    %v719 = vunpack.c.l.b16 %v184
    %v720 = vunpack.c.h.b16 %v184
    %v721 = vunpack.c.l.b16 %v185
    %v722 = vunpack.c.h.b16 %v185
    %v723 = vunpack.c.l.b16 %v186
    %v724 = vunpack.c.h.b16 %v186
    %v725 = vunpack.c.l.b16 %v187
    %v726 = vunpack.c.h.b16 %v187
    %v727 = vunpack.c.l.b16 %v188
    %v728 = vunpack.c.h.b16 %v188
    %v729 = vunpack.c.l.b16 %v189
    %v730 = vunpack.c.h.b16 %v189
    %v731 = vunpack.c.l.b16 %v190
    %v732 = vunpack.c.h.b16 %v190
    %v733 = vunpack.c.l.b16 %v191
    %v734 = vunpack.c.h.b16 %v191
    %v735 = vunpack.c.l.b16 %v192
    %v736 = vunpack.c.h.b16 %v192
    %v737 = vunpack.c.l.b16 %v193
    %v738 = vunpack.c.h.b16 %v193
    %v739 = vunpack.c.l.b16 %v194
    %v740 = vunpack.c.h.b16 %v194
    %v741 = vunpack.c.l.b16 %v195
    %v742 = vunpack.c.h.b16 %v195
    %v743 = vunpack.c.l.b16 %v196
    %v744 = vunpack.c.h.b16 %v196
    %v745 = vunpack.c.l.b16 %v197
    %v746 = vunpack.c.h.b16 %v197
    %v747 = vunpack.c.l.b16 %v198
    %v748 = vunpack.c.h.b16 %v198
    %v749 = vunpack.c.l.b16 %v199
    %v750 = vunpack.c.h.b16 %v199
    %v751 = vunpack.c.l.b16 %v200
    %v752 = vunpack.c.h.b16 %v200
    %v753 = vunpack.c.l.b16 %v201
    %v754 = vunpack.c.h.b16 %v201
    %v755 = vunpack.c.l.b16 %v202
    %v756 = vunpack.c.h.b16 %v202
    %v757 = vunpack.c.l.b16 %v203
    %v758 = vunpack.c.h.b16 %v203
    %v759 = vunpack.c.l.b16 %v204
    %v760 = vunpack.c.h.b16 %v204
    %v761 = vunpack.c.l.b16 %v205
    %v762 = vunpack.c.h.b16 %v205
    %v763 = vunpack.c.l.b16 %v206
    %v764 = vunpack.c.h.b16 %v206
    %v765 = vunpack.c.l.b16 %v207
    %v766 = vunpack.c.h.b16 %v207
    %v767 = vunpack.c.l.b16 %v208
    %v768 = vunpack.c.h.b16 %v208
    %v769 = vunpack.c.l.b16 %v209
    %v770 = vunpack.c.h.b16 %v209
    %v771 = vunpack.c.l.b16 %v210
    %v772 = vunpack.c.h.b16 %v210
    %v773 = vunpack.c.l.b16 %v211
    %v774 = vunpack.c.h.b16 %v211
    %v775 = vunpack.c.l.b16 %v212
    %v776 = vunpack.c.h.b16 %v212
    %v777 = vunpack.c.l.b16 %v213
    %v778 = vunpack.c.h.b16 %v213
    %v779 = vunpack.c.l.b16 %v214
    %v780 = vunpack.c.h.b16 %v214
    %v781 = vunpack.c.l.b16 %v215
    %v782 = vunpack.c.h.b16 %v215
    %v783 = vunpack.c.l.b16 %v216
    %v784 = vunpack.c.h.b16 %v216
    %v785 = vunpack.c.l.b16 %v217
    %v786 = vunpack.c.h.b16 %v217
    %v787 = vunpack.c.l.b16 %v218
    %v788 = vunpack.c.h.b16 %v218
    %v789 = vunpack.c.l.b16 %v219
    %v790 = vunpack.c.h.b16 %v219
    %v791 = vunpack.c.l.b16 %v220
    %v792 = vunpack.c.h.b16 %v220
    %v793 = vunpack.c.l.b16 %v221
    %v794 = vunpack.c.h.b16 %v221
    %v795 = vunpack.c.l.b16 %v222
    %v796 = vunpack.c.h.b16 %v222
    %v797 = vunpack.c.l.b16 %v223
    %v798 = vunpack.c.h.b16 %v223
    %v799 = vunpack.c.l.b16 %v224
    %v800 = vunpack.c.h.b16 %v224
    %v801 = vunpack.c.l.b16 %v225
    %v802 = vunpack.c.h.b16 %v225
    %v803 = vunpack.c.l.b16 %v226
    %v804 = vunpack.c.h.b16 %v226
    %v805 = vunpack.c.l.b16 %v227
    %v806 = vunpack.c.h.b16 %v227
    %v807 = vunpack.c.l.b16 %v228
    %v808 = vunpack.c.h.b16 %v228
    %v809 = vunpack.c.l.b16 %v229
    %v810 = vunpack.c.h.b16 %v229
    %v811 = vunpack.c.l.b16 %v230
    %v812 = vunpack.c.h.b16 %v230
    %v813 = vunpack.c.l.b16 %v231
    %v814 = vunpack.c.h.b16 %v231
    %v815 = vunpack.c.l.b16 %v232
    %v816 = vunpack.c.h.b16 %v232
    %v817 = vunpack.c.l.b16 %v233
    %v818 = vunpack.c.h.b16 %v233
    %v819 = vunpack.c.l.b16 %v234
    %v820 = vunpack.c.h.b16 %v234
    %v821 = vunpack.c.l.b16 %v235
    %v822 = vunpack.c.h.b16 %v235
    %v823 = vunpack.c.l.b16 %v236
    %v824 = vunpack.c.h.b16 %v236
    %v825 = vunpack.c.l.b16 %v237
    %v826 = vunpack.c.h.b16 %v237
    %v827 = vunpack.c.l.b16 %v238
    %v828 = vunpack.c.h.b16 %v238
    %v829 = vunpack.c.l.b16 %v239
    %v830 = vunpack.c.h.b16 %v239
    %v831 = vunpack.c.l.b16 %v240
    %v832 = vunpack.c.h.b16 %v240
    %v833 = vunpack.c.l.b16 %v241
    %v834 = vunpack.c.h.b16 %v241
    %v835 = vunpack.c.l.b16 %v242
    %v836 = vunpack.c.h.b16 %v242
    %v837 = vunpack.c.l.b16 %v243
    %v838 = vunpack.c.h.b16 %v243
    %v839 = vunpack.c.l.b16 %v244
    %v840 = vunpack.c.h.b16 %v244
    %v841 = vunpack.c.l.b16 %v245
    %v842 = vunpack.c.h.b16 %v245
    %v843 = vunpack.c.l.b16 %v246
    %v844 = vunpack.c.h.b16 %v246
    %v845 = vunpack.c.l.b16 %v247
    %v846 = vunpack.c.h.b16 %v247
    %v847 = vunpack.c.l.b16 %v248
    %v848 = vunpack.c.h.b16 %v248
    %v849 = vunpack.c.l.b16 %v249
    %v850 = vunpack.c.h.b16 %v249
    %v851 = vunpack.c.l.b16 %v250
    %v852 = vunpack.c.h.b16 %v250
    %v853 = vunpack.c.l.b16 %v251
    %v854 = vunpack.c.h.b16 %v251
    %v855 = vunpack.c.l.b16 %v252
    %v856 = vunpack.c.h.b16 %v252
    %v857 = vunpack.c.l.b16 %v253
    %v858 = vunpack.c.h.b16 %v253
    %v859 = vunpack.c.l.b16 %v254
    %v860 = vunpack.c.h.b16 %v254
    %v861 = vunpack.c.l.b16 %v255
    %v862 = vunpack.c.h.b16 %v255
    %v863 = vunpack.c.l.b16 %v256
    %v864 = vunpack.c.h.b16 %v256
    %v865 = vunpack.c.l.b16 %v257
    %v866 = vunpack.c.h.b16 %v257
    %v867 = vunpack.c.l.b16 %v258
    %v868 = vunpack.c.h.b16 %v258
    %v869 = vunpack.c.l.b16 %v259
    %v870 = vunpack.c.h.b16 %v259
    %v871 = vunpack.c.l.b16 %v260
    %v872 = vunpack.c.h.b16 %v260
    %v873 = vunpack.c.l.b16 %v261
    %v874 = vunpack.c.h.b16 %v261
    %v875 = vunpack.c.l.b16 %v262
    %v876 = vunpack.c.h.b16 %v262
    %v877 = vunpack.c.l.b16 %v263
    %v878 = vunpack.c.h.b16 %v263
    %v879 = vunpack.c.l.b16 %v264
    %v880 = vunpack.c.h.b16 %v264
    %v881 = vunpack.c.l.b16 %v265
    %v882 = vunpack.c.h.b16 %v265
    %v883 = vunpack.c.l.b16 %v266
    %v884 = vunpack.c.h.b16 %v266
    %v885 = vunpack.c.l.b16 %v267
    %v886 = vunpack.c.h.b16 %v267
    %v887 = vunpack.c.l.b16 %v268
    %v888 = vunpack.c.h.b16 %v268
    %v889 = vunpack.c.l.b16 %v269
    %v890 = vunpack.c.h.b16 %v269
    %v891 = vunpack.c.l.b16 %v270
    %v892 = vunpack.c.h.b16 %v270
    %v893 = vunpack.c.l.b16 %v271
    %v894 = vunpack.c.h.b16 %v271
    %v895 = vunpack.c.l.b16 %v272
    %v896 = vunpack.c.h.b16 %v272
    %v897 = vunpack.c.l.b16 %v273
    %v898 = vunpack.c.h.b16 %v273
    %v899 = vunpack.c.l.b16 %v274
    %v900 = vunpack.c.h.b16 %v274
    %v901 = vunpack.c.l.b16 %v275
    %v902 = vunpack.c.h.b16 %v275
    %v903 = vunpack.c.l.b16 %v276
    %v904 = vunpack.c.h.b16 %v276
    %v905 = vunpack.c.l.b16 %v277
    %v906 = vunpack.c.h.b16 %v277
    %v907 = vunpack.c.l.b16 %v278
    %v908 = vunpack.c.h.b16 %v278
    %v909 = vpack.c.b16 %v687, %v685
    %v910 = vpack.c.b16 %v688, %v686
    %v911 = vpack.c.b16 %v691, %v689
    %v912 = vpack.c.b16 %v692, %v690
    %v913 = vpack.c.b16 %v695, %v693
    %v914 = vpack.c.b16 %v696, %v694
    %v915 = vpack.c.b16 %v699, %v697
    %v916 = vpack.c.b16 %v700, %v698
    %v917 = vpack.c.b16 %v703, %v701
    %v918 = vpack.c.b16 %v704, %v702
    %v919 = vpack.c.b16 %v707, %v705
    %v920 = vpack.c.b16 %v708, %v706
    %v921 = vpack.c.b16 %v711, %v709
    %v922 = vpack.c.b16 %v712, %v710
    %v923 = vpack.c.b16 %v715, %v713
    %v924 = vpack.c.b16 %v716, %v714
    %v925 = vpack.c.b16 %v719, %v717
    %v926 = vpack.c.b16 %v720, %v718
    %v927 = vpack.c.b16 %v723, %v721
    %v928 = vpack.c.b16 %v724, %v722
    %v929 = vpack.c.b16 %v727, %v725
    %v930 = vpack.c.b16 %v728, %v726
    %v931 = vpack.c.b16 %v731, %v729
    %v932 = vpack.c.b16 %v732, %v730
    %v933 = vpack.c.b16 %v735, %v733
    %v934 = vpack.c.b16 %v736, %v734
    %v935 = vpack.c.b16 %v739, %v737
    %v936 = vpack.c.b16 %v740, %v738
    %v937 = vpack.c.b16 %v743, %v741
    %v938 = vpack.c.b16 %v744, %v742
    %v939 = vpack.c.b16 %v747, %v745
    %v940 = vpack.c.b16 %v748, %v746
    %v941 = vpack.c.b16 %v751, %v749
    %v942 = vpack.c.b16 %v752, %v750
    %v943 = vpack.c.b16 %v755, %v753
    %v944 = vpack.c.b16 %v756, %v754
    %v945 = vpack.c.b16 %v759, %v757
    %v946 = vpack.c.b16 %v760, %v758
    %v947 = vpack.c.b16 %v763, %v761
    %v948 = vpack.c.b16 %v764, %v762
    %v949 = vpack.c.b16 %v767, %v765
    %v950 = vpack.c.b16 %v768, %v766
    %v951 = vpack.c.b16 %v771, %v769
    %v952 = vpack.c.b16 %v772, %v770
    %v953 = vpack.c.b16 %v775, %v773
    %v954 = vpack.c.b16 %v776, %v774
    %v955 = vpack.c.b16 %v779, %v777
    %v956 = vpack.c.b16 %v780, %v778
    %v957 = vpack.c.b16 %v783, %v781
    %v958 = vpack.c.b16 %v784, %v782
    %v959 = vpack.c.b16 %v787, %v785
    %v960 = vpack.c.b16 %v788, %v786
    %v961 = vpack.c.b16 %v791, %v789
    %v962 = vpack.c.b16 %v792, %v790
    %v963 = vpack.c.b16 %v795, %v793
    %v964 = vpack.c.b16 %v796, %v794
    %v965 = vpack.c.b16 %v799, %v797
    %v966 = vpack.c.b16 %v800, %v798
    %v967 = vpack.c.b16 %v803, %v801
    %v968 = vpack.c.b16 %v804, %v802
    %v969 = vpack.c.b16 %v807, %v805
    %v970 = vpack.c.b16 %v808, %v806
    %v971 = vpack.c.b16 %v811, %v809
    %v972 = vpack.c.b16 %v812, %v810
    %v973 = vpack.c.b16 %v815, %v813
    %v974 = vpack.c.b16 %v816, %v814
    %v975 = vpack.c.b16 %v819, %v817
    %v976 = vpack.c.b16 %v820, %v818
    %v977 = vpack.c.b16 %v823, %v821
    %v978 = vpack.c.b16 %v824, %v822
    %v979 = vpack.c.b16 %v827, %v825
    %v980 = vpack.c.b16 %v828, %v826
    %v981 = vpack.c.b16 %v831, %v829
    %v982 = vpack.c.b16 %v832, %v830
    %v983 = vpack.c.b16 %v835, %v833
    %v984 = vpack.c.b16 %v836, %v834
    %v985 = vpack.c.b16 %v839, %v837
    %v986 = vpack.c.b16 %v840, %v838
    %v987 = vpack.c.b16 %v843, %v841
    %v988 = vpack.c.b16 %v844, %v842
    %v989 = vpack.c.b16 %v847, %v845
    %v990 = vpack.c.b16 %v848, %v846
    %v991 = vpack.c.b16 %v851, %v849
    %v992 = vpack.c.b16 %v852, %v850
    %v993 = vpack.c.b16 %v855, %v853
    %v994 = vpack.c.b16 %v856, %v854
    %v995 = vpack.c.b16 %v859, %v857
    %v996 = vpack.c.b16 %v860, %v858
    %v997 = vpack.c.b16 %v863, %v861
    %v998 = vpack.c.b16 %v864, %v862
    %v999 = vpack.c.b16 %v867, %v865
    %v1000 = vpack.c.b16 %v868, %v866
    %v1001 = vpack.c.b16 %v871, %v869
    %v1002 = vpack.c.b16 %v872, %v870
    %v1003 = vpack.c.b16 %v875, %v873
    %v1004 = vpack.c.b16 %v876, %v874
    %v1005 = vpack.c.b16 %v879, %v877
    %v1006 = vpack.c.b16 %v880, %v878
    %v1007 = vpack.c.b16 %v883, %v881
    %v1008 = vpack.c.b16 %v884, %v882
    %v1009 = vpack.c.b16 %v887, %v885
    %v1010 = vpack.c.b16 %v888, %v886
    %v1011 = vpack.c.b16 %v891, %v889
    %v1012 = vpack.c.b16 %v892, %v890
    %v1013 = vpack.c.b16 %v895, %v893
    %v1014 = vpack.c.b16 %v896, %v894
    %v1015 = vpack.c.b16 %v899, %v897
    %v1016 = vpack.c.b16 %v900, %v898
    %v1017 = vpack.c.b16 %v903, %v901
    %v1018 = vpack.c.b16 %v904, %v902
    %v1019 = vpack.c.b16 %v907, %v905
    %v1020 = vpack.c.b16 %v908, %v906
    %1133 = vmatpush.bf16.msra.mxu0 %v923
    %1134 = vmatpush.bf16.msra.mxu0 %v921
    %1135 = vmatpush.bf16.msra.mxu0 %v919
    %1136 = vmatpush.bf16.msra.mxu0 %v917
    %1137 = vmatpush.bf16.msra.mxu0 %v915
    %1138 = vmatpush.bf16.msra.mxu0 %v913
    %1139 = vmatpush.bf16.msra.mxu0 %v911
    %1140 = vmatpush.bf16.msra.mxu0 %v909
    %1141 = vmatmul.bf16.gmra.mxu0 %v461
    %v1142 = vpop.f32.mrf.mxu0
    %v1143 = vadd.f32 %v281, %v1142
    %v1144 = vpop.f32.mrf.mxu0
    %v1145 = vadd.f32 %v281, %v1144
    %1146 = vmatmul.bf16.gmra.mxu0 %v468
    %v1147 = vpop.f32.mrf.mxu0
    %v1148 = vadd.f32 %v281, %v1147
    %v1149 = vpop.f32.mrf.mxu0
    %v1150 = vadd.f32 %v281, %v1149
    %1151 = vmatmul.bf16.gmra.mxu0 %v475
    %v1152 = vpop.f32.mrf.mxu0
    %v1153 = vadd.f32 %v281, %v1152
    %v1154 = vpop.f32.mrf.mxu0
    %v1155 = vadd.f32 %v281, %v1154
    %1156 = vmatmul.bf16.gmra.mxu0 %v482
    %v1157 = vpop.f32.mrf.mxu0
    %v1158 = vadd.f32 %v281, %v1157
    %v1159 = vpop.f32.mrf.mxu0
    %v1160 = vadd.f32 %v281, %v1159
    %1161 = vmatmul.bf16.gmra.mxu0 %v489
    %v1162 = vpop.f32.mrf.mxu0
    %v1163 = vadd.f32 %v281, %v1162
    %v1164 = vpop.f32.mrf.mxu0
    %v1165 = vadd.f32 %v281, %v1164
    %1166 = vmatmul.bf16.gmra.mxu0 %v496
    %v1167 = vpop.f32.mrf.mxu0
    %v1168 = vadd.f32 %v281, %v1167
    %v1169 = vpop.f32.mrf.mxu0
    %v1170 = vadd.f32 %v281, %v1169
    %1171 = vmatmul.bf16.gmra.mxu0 %v503
    %v1172 = vpop.f32.mrf.mxu0
    %v1173 = vadd.f32 %v281, %v1172
    %v1174 = vpop.f32.mrf.mxu0
    %v1175 = vadd.f32 %v281, %v1174
    %1176 = vmatmul.bf16.gmra.mxu0 %v510
    %v1177 = vpop.f32.mrf.mxu0
    %v1178 = vadd.f32 %v281, %v1177
    %v1179 = vpop.f32.mrf.mxu0
    %v1180 = vadd.f32 %v281, %v1179
    %1181 = vdwg.mxu0
    %1182 = vmatpush.bf16.msra.mxu0 %v939
    %1183 = vmatpush.bf16.msra.mxu0 %v937
    %1184 = vmatpush.bf16.msra.mxu0 %v935
    %1185 = vmatpush.bf16.msra.mxu0 %v933
    %1186 = vmatpush.bf16.msra.mxu0 %v931
    %1187 = vmatpush.bf16.msra.mxu0 %v929
    %1188 = vmatpush.bf16.msra.mxu0 %v927
    %1189 = vmatpush.bf16.msra.mxu0 %v925
    %1190 = vmatmul.bf16.gmra.mxu0 %v462
    %v1191 = vpop.f32.mrf.mxu0
    %v1192 = vadd.f32 %v1143, %v1191
    %v1193 = vpop.f32.mrf.mxu0
    %v1194 = vadd.f32 %v1145, %v1193
    %1195 = vmatmul.bf16.gmra.mxu0 %v469
    %v1196 = vpop.f32.mrf.mxu0
    %v1197 = vadd.f32 %v1148, %v1196
    %v1198 = vpop.f32.mrf.mxu0
    %v1199 = vadd.f32 %v1150, %v1198
    %1200 = vmatmul.bf16.gmra.mxu0 %v476
    %v1201 = vpop.f32.mrf.mxu0
    %v1202 = vadd.f32 %v1153, %v1201
    %v1203 = vpop.f32.mrf.mxu0
    %v1204 = vadd.f32 %v1155, %v1203
    %1205 = vmatmul.bf16.gmra.mxu0 %v483
    %v1206 = vpop.f32.mrf.mxu0
    %v1207 = vadd.f32 %v1158, %v1206
    %v1208 = vpop.f32.mrf.mxu0
    %v1209 = vadd.f32 %v1160, %v1208
    %1210 = vmatmul.bf16.gmra.mxu0 %v490
    %v1211 = vpop.f32.mrf.mxu0
    %v1212 = vadd.f32 %v1163, %v1211
    %v1213 = vpop.f32.mrf.mxu0
    %v1214 = vadd.f32 %v1165, %v1213
    %1215 = vmatmul.bf16.gmra.mxu0 %v497
    %v1216 = vpop.f32.mrf.mxu0
    %v1217 = vadd.f32 %v1168, %v1216
    %v1218 = vpop.f32.mrf.mxu0
    %v1219 = vadd.f32 %v1170, %v1218
    %1220 = vmatmul.bf16.gmra.mxu0 %v504
    %v1221 = vpop.f32.mrf.mxu0
    %v1222 = vadd.f32 %v1173, %v1221
    %v1223 = vpop.f32.mrf.mxu0
    %v1224 = vadd.f32 %v1175, %v1223
    %1225 = vmatmul.bf16.gmra.mxu0 %v511
    %v1226 = vpop.f32.mrf.mxu0
    %v1227 = vadd.f32 %v1178, %v1226
    %v1228 = vpop.f32.mrf.mxu0
    %v1229 = vadd.f32 %v1180, %v1228
    %1230 = vdwg.mxu0
    %1231 = vmatpush.bf16.msra.mxu0 %v955
    %1232 = vmatpush.bf16.msra.mxu0 %v953
    %1233 = vmatpush.bf16.msra.mxu0 %v951
    %1234 = vmatpush.bf16.msra.mxu0 %v949
    %1235 = vmatpush.bf16.msra.mxu0 %v947
    %1236 = vmatpush.bf16.msra.mxu0 %v945
    %1237 = vmatpush.bf16.msra.mxu0 %v943
    %1238 = vmatpush.bf16.msra.mxu0 %v941
    %1239 = vmatmul.bf16.gmra.mxu0 %v463
    %v1240 = vpop.f32.mrf.mxu0
    %v1241 = vadd.f32 %v1192, %v1240
    %v1242 = vpop.f32.mrf.mxu0
    %v1243 = vadd.f32 %v1194, %v1242
    %1244 = vmatmul.bf16.gmra.mxu0 %v470
    %v1245 = vpop.f32.mrf.mxu0
    %v1246 = vadd.f32 %v1197, %v1245
    %v1247 = vpop.f32.mrf.mxu0
    %v1248 = vadd.f32 %v1199, %v1247
    %1249 = vmatmul.bf16.gmra.mxu0 %v477
    %v1250 = vpop.f32.mrf.mxu0
    %v1251 = vadd.f32 %v1202, %v1250
    %v1252 = vpop.f32.mrf.mxu0
    %v1253 = vadd.f32 %v1204, %v1252
    %1254 = vmatmul.bf16.gmra.mxu0 %v484
    %v1255 = vpop.f32.mrf.mxu0
    %v1256 = vadd.f32 %v1207, %v1255
    %v1257 = vpop.f32.mrf.mxu0
    %v1258 = vadd.f32 %v1209, %v1257
    %1259 = vmatmul.bf16.gmra.mxu0 %v491
    %v1260 = vpop.f32.mrf.mxu0
    %v1261 = vadd.f32 %v1212, %v1260
    %v1262 = vpop.f32.mrf.mxu0
    %v1263 = vadd.f32 %v1214, %v1262
    %1264 = vmatmul.bf16.gmra.mxu0 %v498
    %v1265 = vpop.f32.mrf.mxu0
    %v1266 = vadd.f32 %v1217, %v1265
    %v1267 = vpop.f32.mrf.mxu0
    %v1268 = vadd.f32 %v1219, %v1267
    %1269 = vmatmul.bf16.gmra.mxu0 %v505
    %v1270 = vpop.f32.mrf.mxu0
    %v1271 = vadd.f32 %v1222, %v1270
    %v1272 = vpop.f32.mrf.mxu0
    %v1273 = vadd.f32 %v1224, %v1272
    %1274 = vmatmul.bf16.gmra.mxu0 %v512
    %v1275 = vpop.f32.mrf.mxu0
    %v1276 = vadd.f32 %v1227, %v1275
    %v1277 = vpop.f32.mrf.mxu0
    %v1278 = vadd.f32 %v1229, %v1277
    %1279 = vdwg.mxu0
    %1280 = vmatpush.bf16.msra.mxu0 %v971
    %1281 = vmatpush.bf16.msra.mxu0 %v969
    %1282 = vmatpush.bf16.msra.mxu0 %v967
    %1283 = vmatpush.bf16.msra.mxu0 %v965
    %1284 = vmatpush.bf16.msra.mxu0 %v963
    %1285 = vmatpush.bf16.msra.mxu0 %v961
    %1286 = vmatpush.bf16.msra.mxu0 %v959
    %1287 = vmatpush.bf16.msra.mxu0 %v957
    %1288 = vmatmul.bf16.gmra.mxu0 %v464
    %v1289 = vpop.f32.mrf.mxu0
    %v1290 = vadd.f32 %v1241, %v1289
    %v1291 = vpop.f32.mrf.mxu0
    %v1292 = vadd.f32 %v1243, %v1291
    %1293 = vmatmul.bf16.gmra.mxu0 %v471
    %v1294 = vpop.f32.mrf.mxu0
    %v1295 = vadd.f32 %v1246, %v1294
    %v1296 = vpop.f32.mrf.mxu0
    %v1297 = vadd.f32 %v1248, %v1296
    %1298 = vmatmul.bf16.gmra.mxu0 %v478
    %v1299 = vpop.f32.mrf.mxu0
    %v1300 = vadd.f32 %v1251, %v1299
    %v1301 = vpop.f32.mrf.mxu0
    %v1302 = vadd.f32 %v1253, %v1301
    %1303 = vmatmul.bf16.gmra.mxu0 %v485
    %v1304 = vpop.f32.mrf.mxu0
    %v1305 = vadd.f32 %v1256, %v1304
    %v1306 = vpop.f32.mrf.mxu0
    %v1307 = vadd.f32 %v1258, %v1306
    %1308 = vmatmul.bf16.gmra.mxu0 %v492
    %v1309 = vpop.f32.mrf.mxu0
    %v1310 = vadd.f32 %v1261, %v1309
    %v1311 = vpop.f32.mrf.mxu0
    %v1312 = vadd.f32 %v1263, %v1311
    %1313 = vmatmul.bf16.gmra.mxu0 %v499
    %v1314 = vpop.f32.mrf.mxu0
    %v1315 = vadd.f32 %v1266, %v1314
    %v1316 = vpop.f32.mrf.mxu0
    %v1317 = vadd.f32 %v1268, %v1316
    %1318 = vmatmul.bf16.gmra.mxu0 %v506
    %v1319 = vpop.f32.mrf.mxu0
    %v1320 = vadd.f32 %v1271, %v1319
    %v1321 = vpop.f32.mrf.mxu0
    %v1322 = vadd.f32 %v1273, %v1321
    %1323 = vmatmul.bf16.gmra.mxu0 %v513
    %v1324 = vpop.f32.mrf.mxu0
    %v1325 = vadd.f32 %v1276, %v1324
    %v1326 = vpop.f32.mrf.mxu0
    %v1327 = vadd.f32 %v1278, %v1326
    %1328 = vdwg.mxu0
    %1329 = vmatpush.bf16.msra.mxu0 %v987
    %1330 = vmatpush.bf16.msra.mxu0 %v985
    %1331 = vmatpush.bf16.msra.mxu0 %v983
    %1332 = vmatpush.bf16.msra.mxu0 %v981
    %1333 = vmatpush.bf16.msra.mxu0 %v979
    %1334 = vmatpush.bf16.msra.mxu0 %v977
    %1335 = vmatpush.bf16.msra.mxu0 %v975
    %1336 = vmatpush.bf16.msra.mxu0 %v973
    %1337 = vmatmul.bf16.gmra.mxu0 %v465
    %v1338 = vpop.f32.mrf.mxu0
    %v1339 = vadd.f32 %v1290, %v1338
    %v1340 = vpop.f32.mrf.mxu0
    %v1341 = vadd.f32 %v1292, %v1340
    %1342 = vmatmul.bf16.gmra.mxu0 %v472
    %v1343 = vpop.f32.mrf.mxu0
    %v1344 = vadd.f32 %v1295, %v1343
    %v1345 = vpop.f32.mrf.mxu0
    %v1346 = vadd.f32 %v1297, %v1345
    %1347 = vmatmul.bf16.gmra.mxu0 %v479
    %v1348 = vpop.f32.mrf.mxu0
    %v1349 = vadd.f32 %v1300, %v1348
    %v1350 = vpop.f32.mrf.mxu0
    %v1351 = vadd.f32 %v1302, %v1350
    %1352 = vmatmul.bf16.gmra.mxu0 %v486
    %v1353 = vpop.f32.mrf.mxu0
    %v1354 = vadd.f32 %v1305, %v1353
    %v1355 = vpop.f32.mrf.mxu0
    %v1356 = vadd.f32 %v1307, %v1355
    %1357 = vmatmul.bf16.gmra.mxu0 %v493
    %v1358 = vpop.f32.mrf.mxu0
    %v1359 = vadd.f32 %v1310, %v1358
    %v1360 = vpop.f32.mrf.mxu0
    %v1361 = vadd.f32 %v1312, %v1360
    %1362 = vmatmul.bf16.gmra.mxu0 %v500
    %v1363 = vpop.f32.mrf.mxu0
    %v1364 = vadd.f32 %v1315, %v1363
    %v1365 = vpop.f32.mrf.mxu0
    %v1366 = vadd.f32 %v1317, %v1365
    %1367 = vmatmul.bf16.gmra.mxu0 %v507
    %v1368 = vpop.f32.mrf.mxu0
    %v1369 = vadd.f32 %v1320, %v1368
    %v1370 = vpop.f32.mrf.mxu0
    %v1371 = vadd.f32 %v1322, %v1370
    %1372 = vmatmul.bf16.gmra.mxu0 %v514
    %v1373 = vpop.f32.mrf.mxu0
    %v1374 = vadd.f32 %v1325, %v1373
    %v1375 = vpop.f32.mrf.mxu0
    %v1376 = vadd.f32 %v1327, %v1375
    %1377 = vdwg.mxu0
    %1378 = vmatpush.bf16.msra.mxu0 %v1003
    %1379 = vmatpush.bf16.msra.mxu0 %v1001
    %1380 = vmatpush.bf16.msra.mxu0 %v999
    %1381 = vmatpush.bf16.msra.mxu0 %v997
    %1382 = vmatpush.bf16.msra.mxu0 %v995
    %1383 = vmatpush.bf16.msra.mxu0 %v993
    %1384 = vmatpush.bf16.msra.mxu0 %v991
    %1385 = vmatpush.bf16.msra.mxu0 %v989
    %1386 = vmatmul.bf16.gmra.mxu0 %v466
    %v1387 = vpop.f32.mrf.mxu0
    %v1388 = vadd.f32 %v1339, %v1387
    %v1389 = vpop.f32.mrf.mxu0
    %v1390 = vadd.f32 %v1341, %v1389
    %1391 = vmatmul.bf16.gmra.mxu0 %v473
    %v1392 = vpop.f32.mrf.mxu0
    %v1393 = vadd.f32 %v1344, %v1392
    %v1394 = vpop.f32.mrf.mxu0
    %v1395 = vadd.f32 %v1346, %v1394
    %1396 = vmatmul.bf16.gmra.mxu0 %v480
    %v1397 = vpop.f32.mrf.mxu0
    %v1398 = vadd.f32 %v1349, %v1397
    %v1399 = vpop.f32.mrf.mxu0
    %v1400 = vadd.f32 %v1351, %v1399
    %1401 = vmatmul.bf16.gmra.mxu0 %v487
    %v1402 = vpop.f32.mrf.mxu0
    %v1403 = vadd.f32 %v1354, %v1402
    %v1404 = vpop.f32.mrf.mxu0
    %v1405 = vadd.f32 %v1356, %v1404
    %1406 = vmatmul.bf16.gmra.mxu0 %v494
    %v1407 = vpop.f32.mrf.mxu0
    %v1408 = vadd.f32 %v1359, %v1407
    %v1409 = vpop.f32.mrf.mxu0
    %v1410 = vadd.f32 %v1361, %v1409
    %1411 = vmatmul.bf16.gmra.mxu0 %v501
    %v1412 = vpop.f32.mrf.mxu0
    %v1413 = vadd.f32 %v1364, %v1412
    %v1414 = vpop.f32.mrf.mxu0
    %v1415 = vadd.f32 %v1366, %v1414
    %1416 = vmatmul.bf16.gmra.mxu0 %v508
    %v1417 = vpop.f32.mrf.mxu0
    %v1418 = vadd.f32 %v1369, %v1417
    %v1419 = vpop.f32.mrf.mxu0
    %v1420 = vadd.f32 %v1371, %v1419
    %1421 = vmatmul.bf16.gmra.mxu0 %v515
    %v1422 = vpop.f32.mrf.mxu0
    %v1423 = vadd.f32 %v1374, %v1422
    %v1424 = vpop.f32.mrf.mxu0
    %v1425 = vadd.f32 %v1376, %v1424
    %1426 = vdwg.mxu0
    %1427 = vmatpush.bf16.msra.mxu0 %v1019
    %1428 = vmatpush.bf16.msra.mxu0 %v1017
    %1429 = vmatpush.bf16.msra.mxu0 %v1015
    %1430 = vmatpush.bf16.msra.mxu0 %v1013
    %1431 = vmatpush.bf16.msra.mxu0 %v1011
    %1432 = vmatpush.bf16.msra.mxu0 %v1009
    %1433 = vmatpush.bf16.msra.mxu0 %v1007
    %1434 = vmatpush.bf16.msra.mxu0 %v1005
    %1435 = vmatmul.bf16.gmra.mxu0 %v467
    %v1436 = vpop.f32.mrf.mxu0
    %v1437 = vadd.f32 %v1388, %v1436
    %v1438 = vpop.f32.mrf.mxu0
    %v1439 = vadd.f32 %v1390, %v1438
    %1440 = vmatmul.bf16.gmra.mxu0 %v474
    %v1441 = vpop.f32.mrf.mxu0
    %v1442 = vadd.f32 %v1393, %v1441
    %v1443 = vpop.f32.mrf.mxu0
    %v1444 = vadd.f32 %v1395, %v1443
    %1445 = vmatmul.bf16.gmra.mxu0 %v481
    %v1446 = vpop.f32.mrf.mxu0
    %v1447 = vadd.f32 %v1398, %v1446
    %v1448 = vpop.f32.mrf.mxu0
    %v1449 = vadd.f32 %v1400, %v1448
    %1450 = vmatmul.bf16.gmra.mxu0 %v488
    %v1451 = vpop.f32.mrf.mxu0
    %v1452 = vadd.f32 %v1403, %v1451
    %v1453 = vpop.f32.mrf.mxu0
    %v1454 = vadd.f32 %v1405, %v1453
    %1455 = vmatmul.bf16.gmra.mxu0 %v495
    %v1456 = vpop.f32.mrf.mxu0
    %v1457 = vadd.f32 %v1408, %v1456
    %v1458 = vpop.f32.mrf.mxu0
    %v1459 = vadd.f32 %v1410, %v1458
    %1460 = vmatmul.bf16.gmra.mxu0 %v502
    %v1461 = vpop.f32.mrf.mxu0
    %v1462 = vadd.f32 %v1413, %v1461
    %v1463 = vpop.f32.mrf.mxu0
    %v1464 = vadd.f32 %v1415, %v1463
    %1465 = vmatmul.bf16.gmra.mxu0 %v509
    %v1466 = vpop.f32.mrf.mxu0
    %v1467 = vadd.f32 %v1418, %v1466
    %v1468 = vpop.f32.mrf.mxu0
    %v1469 = vadd.f32 %v1420, %v1468
    %1470 = vmatmul.bf16.gmra.mxu0 %v516
    %v1471 = vpop.f32.mrf.mxu0
    %v1472 = vadd.f32 %v1423, %v1471
    %v1473 = vpop.f32.mrf.mxu0
    %v1474 = vadd.f32 %v1425, %v1473
    %1475 = vdwg.mxu0
    %1476 = vmatpush.bf16.msra.mxu0 %v924
    %1477 = vmatpush.bf16.msra.mxu0 %v922
    %1478 = vmatpush.bf16.msra.mxu0 %v920
    %1479 = vmatpush.bf16.msra.mxu0 %v918
    %1480 = vmatpush.bf16.msra.mxu0 %v916
    %1481 = vmatpush.bf16.msra.mxu0 %v914
    %1482 = vmatpush.bf16.msra.mxu0 %v912
    %1483 = vmatpush.bf16.msra.mxu0 %v910
    %1484 = vmatmul.bf16.gmra.mxu0 %v461
    %v1485 = vpop.f32.mrf.mxu0
    %v1486 = vadd.f32 %v282, %v1485
    %v1487 = vpop.f32.mrf.mxu0
    %v1488 = vadd.f32 %v282, %v1487
    %1489 = vmatmul.bf16.gmra.mxu0 %v468
    %v1490 = vpop.f32.mrf.mxu0
    %v1491 = vadd.f32 %v282, %v1490
    %v1492 = vpop.f32.mrf.mxu0
    %v1493 = vadd.f32 %v282, %v1492
    %1494 = vmatmul.bf16.gmra.mxu0 %v475
    %v1495 = vpop.f32.mrf.mxu0
    %v1496 = vadd.f32 %v282, %v1495
    %v1497 = vpop.f32.mrf.mxu0
    %v1498 = vadd.f32 %v282, %v1497
    %1499 = vmatmul.bf16.gmra.mxu0 %v482
    %v1500 = vpop.f32.mrf.mxu0
    %v1501 = vadd.f32 %v282, %v1500
    %v1502 = vpop.f32.mrf.mxu0
    %v1503 = vadd.f32 %v282, %v1502
    %1504 = vmatmul.bf16.gmra.mxu0 %v489
    %v1505 = vpop.f32.mrf.mxu0
    %v1506 = vadd.f32 %v282, %v1505
    %v1507 = vpop.f32.mrf.mxu0
    %v1508 = vadd.f32 %v282, %v1507
    %1509 = vmatmul.bf16.gmra.mxu0 %v496
    %v1510 = vpop.f32.mrf.mxu0
    %v1511 = vadd.f32 %v282, %v1510
    %v1512 = vpop.f32.mrf.mxu0
    %v1513 = vadd.f32 %v282, %v1512
    %1514 = vmatmul.bf16.gmra.mxu0 %v503
    %v1515 = vpop.f32.mrf.mxu0
    %v1516 = vadd.f32 %v282, %v1515
    %v1517 = vpop.f32.mrf.mxu0
    %v1518 = vadd.f32 %v282, %v1517
    %1519 = vmatmul.bf16.gmra.mxu0 %v510
    %v1520 = vpop.f32.mrf.mxu0
    %v1521 = vadd.f32 %v282, %v1520
    %v1522 = vpop.f32.mrf.mxu0
    %v1523 = vadd.f32 %v282, %v1522
    %1524 = vdwg.mxu0
    %1525 = vmatpush.bf16.msra.mxu0 %v940
    %1526 = vmatpush.bf16.msra.mxu0 %v938
    %1527 = vmatpush.bf16.msra.mxu0 %v936
    %1528 = vmatpush.bf16.msra.mxu0 %v934
    %1529 = vmatpush.bf16.msra.mxu0 %v932
    %1530 = vmatpush.bf16.msra.mxu0 %v930
    %1531 = vmatpush.bf16.msra.mxu0 %v928
    %1532 = vmatpush.bf16.msra.mxu0 %v926
    %1533 = vmatmul.bf16.gmra.mxu0 %v462
    %v1534 = vpop.f32.mrf.mxu0
    %v1535 = vadd.f32 %v1486, %v1534
    %v1536 = vpop.f32.mrf.mxu0
    %v1537 = vadd.f32 %v1488, %v1536
    %1538 = vmatmul.bf16.gmra.mxu0 %v469
    %v1539 = vpop.f32.mrf.mxu0
    %v1540 = vadd.f32 %v1491, %v1539
    %v1541 = vpop.f32.mrf.mxu0
    %v1542 = vadd.f32 %v1493, %v1541
    %1543 = vmatmul.bf16.gmra.mxu0 %v476
    %v1544 = vpop.f32.mrf.mxu0
    %v1545 = vadd.f32 %v1496, %v1544
    %v1546 = vpop.f32.mrf.mxu0
    %v1547 = vadd.f32 %v1498, %v1546
    %1548 = vmatmul.bf16.gmra.mxu0 %v483
    %v1549 = vpop.f32.mrf.mxu0
    %v1550 = vadd.f32 %v1501, %v1549
    %v1551 = vpop.f32.mrf.mxu0
    %v1552 = vadd.f32 %v1503, %v1551
    %1553 = vmatmul.bf16.gmra.mxu0 %v490
    %v1554 = vpop.f32.mrf.mxu0
    %v1555 = vadd.f32 %v1506, %v1554
    %v1556 = vpop.f32.mrf.mxu0
    %v1557 = vadd.f32 %v1508, %v1556
    %1558 = vmatmul.bf16.gmra.mxu0 %v497
    %v1559 = vpop.f32.mrf.mxu0
    %v1560 = vadd.f32 %v1511, %v1559
    %v1561 = vpop.f32.mrf.mxu0
    %v1562 = vadd.f32 %v1513, %v1561
    %1563 = vmatmul.bf16.gmra.mxu0 %v504
    %v1564 = vpop.f32.mrf.mxu0
    %v1565 = vadd.f32 %v1516, %v1564
    %v1566 = vpop.f32.mrf.mxu0
    %v1567 = vadd.f32 %v1518, %v1566
    %1568 = vmatmul.bf16.gmra.mxu0 %v511
    %v1569 = vpop.f32.mrf.mxu0
    %v1570 = vadd.f32 %v1521, %v1569
    %v1571 = vpop.f32.mrf.mxu0
    %v1572 = vadd.f32 %v1523, %v1571
    %1573 = vdwg.mxu0
    %1574 = vmatpush.bf16.msra.mxu0 %v956
    %1575 = vmatpush.bf16.msra.mxu0 %v954
    %1576 = vmatpush.bf16.msra.mxu0 %v952
    %1577 = vmatpush.bf16.msra.mxu0 %v950
    %1578 = vmatpush.bf16.msra.mxu0 %v948
    %1579 = vmatpush.bf16.msra.mxu0 %v946
    %1580 = vmatpush.bf16.msra.mxu0 %v944
    %1581 = vmatpush.bf16.msra.mxu0 %v942
    %1582 = vmatmul.bf16.gmra.mxu0 %v463
    %v1583 = vpop.f32.mrf.mxu0
    %v1584 = vadd.f32 %v1535, %v1583
    %v1585 = vpop.f32.mrf.mxu0
    %v1586 = vadd.f32 %v1537, %v1585
    %1587 = vmatmul.bf16.gmra.mxu0 %v470
    %v1588 = vpop.f32.mrf.mxu0
    %v1589 = vadd.f32 %v1540, %v1588
    %v1590 = vpop.f32.mrf.mxu0
    %v1591 = vadd.f32 %v1542, %v1590
    %1592 = vmatmul.bf16.gmra.mxu0 %v477
    %v1593 = vpop.f32.mrf.mxu0
    %v1594 = vadd.f32 %v1545, %v1593
    %v1595 = vpop.f32.mrf.mxu0
    %v1596 = vadd.f32 %v1547, %v1595
    %1597 = vmatmul.bf16.gmra.mxu0 %v484
    %v1598 = vpop.f32.mrf.mxu0
    %v1599 = vadd.f32 %v1550, %v1598
    %v1600 = vpop.f32.mrf.mxu0
    %v1601 = vadd.f32 %v1552, %v1600
    %1602 = vmatmul.bf16.gmra.mxu0 %v491
    %v1603 = vpop.f32.mrf.mxu0
    %v1604 = vadd.f32 %v1555, %v1603
    %v1605 = vpop.f32.mrf.mxu0
    %v1606 = vadd.f32 %v1557, %v1605
    %1607 = vmatmul.bf16.gmra.mxu0 %v498
    %v1608 = vpop.f32.mrf.mxu0
    %v1609 = vadd.f32 %v1560, %v1608
    %v1610 = vpop.f32.mrf.mxu0
    %v1611 = vadd.f32 %v1562, %v1610
    %1612 = vmatmul.bf16.gmra.mxu0 %v505
    %v1613 = vpop.f32.mrf.mxu0
    %v1614 = vadd.f32 %v1565, %v1613
    %v1615 = vpop.f32.mrf.mxu0
    %v1616 = vadd.f32 %v1567, %v1615
    %1617 = vmatmul.bf16.gmra.mxu0 %v512
    %v1618 = vpop.f32.mrf.mxu0
    %v1619 = vadd.f32 %v1570, %v1618
    %v1620 = vpop.f32.mrf.mxu0
    %v1621 = vadd.f32 %v1572, %v1620
    %1622 = vdwg.mxu0
    %1623 = vmatpush.bf16.msra.mxu0 %v972
    %1624 = vmatpush.bf16.msra.mxu0 %v970
    %1625 = vmatpush.bf16.msra.mxu0 %v968
    %1626 = vmatpush.bf16.msra.mxu0 %v966
    %1627 = vmatpush.bf16.msra.mxu0 %v964
    %1628 = vmatpush.bf16.msra.mxu0 %v962
    %1629 = vmatpush.bf16.msra.mxu0 %v960
    %1630 = vmatpush.bf16.msra.mxu0 %v958
    %1631 = vmatmul.bf16.gmra.mxu0 %v464
    %v1632 = vpop.f32.mrf.mxu0
    %v1633 = vadd.f32 %v1584, %v1632
    %v1634 = vpop.f32.mrf.mxu0
    %v1635 = vadd.f32 %v1586, %v1634
    %1636 = vmatmul.bf16.gmra.mxu0 %v471
    %v1637 = vpop.f32.mrf.mxu0
    %v1638 = vadd.f32 %v1589, %v1637
    %v1639 = vpop.f32.mrf.mxu0
    %v1640 = vadd.f32 %v1591, %v1639
    %1641 = vmatmul.bf16.gmra.mxu0 %v478
    %v1642 = vpop.f32.mrf.mxu0
    %v1643 = vadd.f32 %v1594, %v1642
    %v1644 = vpop.f32.mrf.mxu0
    %v1645 = vadd.f32 %v1596, %v1644
    %1646 = vmatmul.bf16.gmra.mxu0 %v485
    %v1647 = vpop.f32.mrf.mxu0
    %v1648 = vadd.f32 %v1599, %v1647
    %v1649 = vpop.f32.mrf.mxu0
    %v1650 = vadd.f32 %v1601, %v1649
    %1651 = vmatmul.bf16.gmra.mxu0 %v492
    %v1652 = vpop.f32.mrf.mxu0
    %v1653 = vadd.f32 %v1604, %v1652
    %v1654 = vpop.f32.mrf.mxu0
    %v1655 = vadd.f32 %v1606, %v1654
    %1656 = vmatmul.bf16.gmra.mxu0 %v499
    %v1657 = vpop.f32.mrf.mxu0
    %v1658 = vadd.f32 %v1609, %v1657
    %v1659 = vpop.f32.mrf.mxu0
    %v1660 = vadd.f32 %v1611, %v1659
    %1661 = vmatmul.bf16.gmra.mxu0 %v506
    %v1662 = vpop.f32.mrf.mxu0
    %v1663 = vadd.f32 %v1614, %v1662
    %v1664 = vpop.f32.mrf.mxu0
    %v1665 = vadd.f32 %v1616, %v1664
    %1666 = vmatmul.bf16.gmra.mxu0 %v513
    %v1667 = vpop.f32.mrf.mxu0
    %v1668 = vadd.f32 %v1619, %v1667
    %v1669 = vpop.f32.mrf.mxu0
    %v1670 = vadd.f32 %v1621, %v1669
    %1671 = vdwg.mxu0
    %1672 = vmatpush.bf16.msra.mxu0 %v988
    %1673 = vmatpush.bf16.msra.mxu0 %v986
    %1674 = vmatpush.bf16.msra.mxu0 %v984
    %1675 = vmatpush.bf16.msra.mxu0 %v982
    %1676 = vmatpush.bf16.msra.mxu0 %v980
    %1677 = vmatpush.bf16.msra.mxu0 %v978
    %1678 = vmatpush.bf16.msra.mxu0 %v976
    %1679 = vmatpush.bf16.msra.mxu0 %v974
    %1680 = vmatmul.bf16.gmra.mxu0 %v465
    %v1681 = vpop.f32.mrf.mxu0
    %v1682 = vadd.f32 %v1633, %v1681
    %v1683 = vpop.f32.mrf.mxu0
    %v1684 = vadd.f32 %v1635, %v1683
    %1685 = vmatmul.bf16.gmra.mxu0 %v472
    %v1686 = vpop.f32.mrf.mxu0
    %v1687 = vadd.f32 %v1638, %v1686
    %v1688 = vpop.f32.mrf.mxu0
    %v1689 = vadd.f32 %v1640, %v1688
    %1690 = vmatmul.bf16.gmra.mxu0 %v479
    %v1691 = vpop.f32.mrf.mxu0
    %v1692 = vadd.f32 %v1643, %v1691
    %v1693 = vpop.f32.mrf.mxu0
    %v1694 = vadd.f32 %v1645, %v1693
    %1695 = vmatmul.bf16.gmra.mxu0 %v486
    %v1696 = vpop.f32.mrf.mxu0
    %v1697 = vadd.f32 %v1648, %v1696
    %v1698 = vpop.f32.mrf.mxu0
    %v1699 = vadd.f32 %v1650, %v1698
    %1700 = vmatmul.bf16.gmra.mxu0 %v493
    %v1701 = vpop.f32.mrf.mxu0
    %v1702 = vadd.f32 %v1653, %v1701
    %v1703 = vpop.f32.mrf.mxu0
    %v1704 = vadd.f32 %v1655, %v1703
    %1705 = vmatmul.bf16.gmra.mxu0 %v500
    %v1706 = vpop.f32.mrf.mxu0
    %v1707 = vadd.f32 %v1658, %v1706
    %v1708 = vpop.f32.mrf.mxu0
    %v1709 = vadd.f32 %v1660, %v1708
    %1710 = vmatmul.bf16.gmra.mxu0 %v507
    %v1711 = vpop.f32.mrf.mxu0
    %v1712 = vadd.f32 %v1663, %v1711
    %v1713 = vpop.f32.mrf.mxu0
    %v1714 = vadd.f32 %v1665, %v1713
    %1715 = vmatmul.bf16.gmra.mxu0 %v514
    %v1716 = vpop.f32.mrf.mxu0
    %v1717 = vadd.f32 %v1668, %v1716
    %v1718 = vpop.f32.mrf.mxu0
    %v1719 = vadd.f32 %v1670, %v1718
    %1720 = vdwg.mxu0
    %1721 = vmatpush.bf16.msra.mxu0 %v1004
    %1722 = vmatpush.bf16.msra.mxu0 %v1002
    %1723 = vmatpush.bf16.msra.mxu0 %v1000
    %1724 = vmatpush.bf16.msra.mxu0 %v998
    %1725 = vmatpush.bf16.msra.mxu0 %v996
    %1726 = vmatpush.bf16.msra.mxu0 %v994
    %1727 = vmatpush.bf16.msra.mxu0 %v992
    %1728 = vmatpush.bf16.msra.mxu0 %v990
    %1729 = vmatmul.bf16.gmra.mxu0 %v466
    %v1730 = vpop.f32.mrf.mxu0
    %v1731 = vadd.f32 %v1682, %v1730
    %v1732 = vpop.f32.mrf.mxu0
    %v1733 = vadd.f32 %v1684, %v1732
    %1734 = vmatmul.bf16.gmra.mxu0 %v473
    %v1735 = vpop.f32.mrf.mxu0
    %v1736 = vadd.f32 %v1687, %v1735
    %v1737 = vpop.f32.mrf.mxu0
    %v1738 = vadd.f32 %v1689, %v1737
    %1739 = vmatmul.bf16.gmra.mxu0 %v480
    %v1740 = vpop.f32.mrf.mxu0
    %v1741 = vadd.f32 %v1692, %v1740
    %v1742 = vpop.f32.mrf.mxu0
    %v1743 = vadd.f32 %v1694, %v1742
    %1744 = vmatmul.bf16.gmra.mxu0 %v487
    %v1745 = vpop.f32.mrf.mxu0
    %v1746 = vadd.f32 %v1697, %v1745
    %v1747 = vpop.f32.mrf.mxu0
    %v1748 = vadd.f32 %v1699, %v1747
    %1749 = vmatmul.bf16.gmra.mxu0 %v494
    %v1750 = vpop.f32.mrf.mxu0
    %v1751 = vadd.f32 %v1702, %v1750
    %v1752 = vpop.f32.mrf.mxu0
    %v1753 = vadd.f32 %v1704, %v1752
    %1754 = vmatmul.bf16.gmra.mxu0 %v501
    %v1755 = vpop.f32.mrf.mxu0
    %v1756 = vadd.f32 %v1707, %v1755
    %v1757 = vpop.f32.mrf.mxu0
    %v1758 = vadd.f32 %v1709, %v1757
    %1759 = vmatmul.bf16.gmra.mxu0 %v508
    %v1760 = vpop.f32.mrf.mxu0
    %v1761 = vadd.f32 %v1712, %v1760
    %v1762 = vpop.f32.mrf.mxu0
    %v1763 = vadd.f32 %v1714, %v1762
    %1764 = vmatmul.bf16.gmra.mxu0 %v515
    %v1765 = vpop.f32.mrf.mxu0
    %v1766 = vadd.f32 %v1717, %v1765
    %v1767 = vpop.f32.mrf.mxu0
    %v1768 = vadd.f32 %v1719, %v1767
    %1769 = vdwg.mxu0
    %1770 = vmatpush.bf16.msra.mxu0 %v1020
    %1771 = vmatpush.bf16.msra.mxu0 %v1018
    %1772 = vmatpush.bf16.msra.mxu0 %v1016
    %1773 = vmatpush.bf16.msra.mxu0 %v1014
    %1774 = vmatpush.bf16.msra.mxu0 %v1012
    %1775 = vmatpush.bf16.msra.mxu0 %v1010
    %1776 = vmatpush.bf16.msra.mxu0 %v1008
    %1777 = vmatpush.bf16.msra.mxu0 %v1006
    %1778 = vmatmul.bf16.gmra.mxu0 %v467
    %v1779 = vpop.f32.mrf.mxu0
    %v1780 = vadd.f32 %v1731, %v1779
    %v1781 = vpop.f32.mrf.mxu0
    %v1782 = vadd.f32 %v1733, %v1781
    %1783 = vmatmul.bf16.gmra.mxu0 %v474
    %v1784 = vpop.f32.mrf.mxu0
    %v1785 = vadd.f32 %v1736, %v1784
    %v1786 = vpop.f32.mrf.mxu0
    %v1787 = vadd.f32 %v1738, %v1786
    %1788 = vmatmul.bf16.gmra.mxu0 %v481
    %v1789 = vpop.f32.mrf.mxu0
    %v1790 = vadd.f32 %v1741, %v1789
    %v1791 = vpop.f32.mrf.mxu0
    %v1792 = vadd.f32 %v1743, %v1791
    %1793 = vmatmul.bf16.gmra.mxu0 %v488
    %v1794 = vpop.f32.mrf.mxu0
    %v1795 = vadd.f32 %v1746, %v1794
    %v1796 = vpop.f32.mrf.mxu0
    %v1797 = vadd.f32 %v1748, %v1796
    %1798 = vmatmul.bf16.gmra.mxu0 %v495
    %v1799 = vpop.f32.mrf.mxu0
    %v1800 = vadd.f32 %v1751, %v1799
    %v1801 = vpop.f32.mrf.mxu0
    %v1802 = vadd.f32 %v1753, %v1801
    %1803 = vmatmul.bf16.gmra.mxu0 %v502
    %v1804 = vpop.f32.mrf.mxu0
    %v1805 = vadd.f32 %v1756, %v1804
    %v1806 = vpop.f32.mrf.mxu0
    %v1807 = vadd.f32 %v1758, %v1806
    %1808 = vmatmul.bf16.gmra.mxu0 %v509
    %v1809 = vpop.f32.mrf.mxu0
    %v1810 = vadd.f32 %v1761, %v1809
    %v1811 = vpop.f32.mrf.mxu0
    %v1812 = vadd.f32 %v1763, %v1811
    %1813 = vmatmul.bf16.gmra.mxu0 %v516
    %v1814 = vpop.f32.mrf.mxu0
    %v1815 = vadd.f32 %v1766, %v1814
    %v1816 = vpop.f32.mrf.mxu0
    %v1817 = vadd.f32 %v1768, %v1816
    %1818 = vdwg.mxu0
    %v1819 = vmax.f32 %v1437, 0.0
    %v1820 = vmax.f32 %v1780, 0.0
    %v1821 = vmax.f32 %v1439, 0.0
    %v1822 = vmax.f32 %v1782, 0.0
    %v1823 = vmax.f32 %v1442, 0.0
    %v1824 = vmax.f32 %v1785, 0.0
    %v1825 = vmax.f32 %v1444, 0.0
    %v1826 = vmax.f32 %v1787, 0.0
    %v1827 = vmax.f32 %v1447, 0.0
    %v1828 = vmax.f32 %v1790, 0.0
    %v1829 = vmax.f32 %v1449, 0.0
    %v1830 = vmax.f32 %v1792, 0.0
    %v1831 = vmax.f32 %v1452, 0.0
    %v1832 = vmax.f32 %v1795, 0.0
    %v1833 = vmax.f32 %v1454, 0.0
    %v1834 = vmax.f32 %v1797, 0.0
    %v1835 = vmax.f32 %v1457, 0.0
    %v1836 = vmax.f32 %v1800, 0.0
    %v1837 = vmax.f32 %v1459, 0.0
    %v1838 = vmax.f32 %v1802, 0.0
    %v1839 = vmax.f32 %v1462, 0.0
    %v1840 = vmax.f32 %v1805, 0.0
    %v1841 = vmax.f32 %v1464, 0.0
    %v1842 = vmax.f32 %v1807, 0.0
    %v1843 = vmax.f32 %v1467, 0.0
    %v1844 = vmax.f32 %v1810, 0.0
    %v1845 = vmax.f32 %v1469, 0.0
    %v1846 = vmax.f32 %v1812, 0.0
    %v1847 = vmax.f32 %v1472, 0.0
    %v1848 = vmax.f32 %v1815, 0.0
    %v1849 = vmax.f32 %v1474, 0.0
    %v1850 = vmax.f32 %v1817, 0.0
    %v1851 = vpack.c.bf16 %v1821, %v1819
    %v1852 = vpack.c.bf16 %v1822, %v1820
    %v1853 = vpack.c.bf16 %v1825, %v1823
    %v1854 = vpack.c.bf16 %v1826, %v1824
    %v1855 = vpack.c.bf16 %v1829, %v1827
    %v1856 = vpack.c.bf16 %v1830, %v1828
    %v1857 = vpack.c.bf16 %v1833, %v1831
    %v1858 = vpack.c.bf16 %v1834, %v1832
    %v1859 = vpack.c.bf16 %v1837, %v1835
    %v1860 = vpack.c.bf16 %v1838, %v1836
    %v1861 = vpack.c.bf16 %v1841, %v1839
    %v1862 = vpack.c.bf16 %v1842, %v1840
    %v1863 = vpack.c.bf16 %v1845, %v1843
    %v1864 = vpack.c.bf16 %v1846, %v1844
    %v1865 = vpack.c.bf16 %v1849, %v1847
    %v1866 = vpack.c.bf16 %v1850, %v1848
    %v1867 = vld [vmem:[#allocation8] sm:$0xff]
    %v1868 = vld [vmem:[#allocation8 + $0x8] sm:$0xff]
    %v1869 = vld [vmem:[#allocation8 + $0x10] sm:$0xff]
    %v1870 = vld [vmem:[#allocation8 + $0x18] sm:$0xff]
    %v1871 = vld [vmem:[#allocation8 + $0x20] sm:$0xff]
    %v1872 = vld [vmem:[#allocation8 + $0x28] sm:$0xff]
    %v1873 = vld [vmem:[#allocation8 + $0x30] sm:$0xff]
    %v1874 = vld [vmem:[#allocation8 + $0x38] sm:$0xff]
    %v1875 = vld [vmem:[#allocation8 + $0x40] sm:$0xff]
    %v1876 = vld [vmem:[#allocation8 + $0x48] sm:$0xff]
    %v1877 = vld [vmem:[#allocation8 + $0x50] sm:$0xff]
    %v1878 = vld [vmem:[#allocation8 + $0x58] sm:$0xff]
    %v1879 = vld [vmem:[#allocation8 + $0x60] sm:$0xff]
    %v1880 = vld [vmem:[#allocation8 + $0x68] sm:$0xff]
    %v1881 = vld [vmem:[#allocation8 + $0x70] sm:$0xff]
    %v1882 = vld [vmem:[#allocation8 + $0x78] sm:$0xff]
    %v1883 = vld [vmem:[#allocation8 + $0x80] sm:$0xff]
    %v1884 = vld [vmem:[#allocation8 + $0x88] sm:$0xff]
    %v1885 = vld [vmem:[#allocation8 + $0x90] sm:$0xff]
    %v1886 = vld [vmem:[#allocation8 + $0x98] sm:$0xff]
    %v1887 = vld [vmem:[#allocation8 + $0xa0] sm:$0xff]
    %v1888 = vld [vmem:[#allocation8 + $0xa8] sm:$0xff]
    %v1889 = vld [vmem:[#allocation8 + $0xb0] sm:$0xff]
    %v1890 = vld [vmem:[#allocation8 + $0xb8] sm:$0xff]
    %v1891 = vld [vmem:[#allocation8 + $0xc0] sm:$0xff]
    %v1892 = vld [vmem:[#allocation8 + $0xc8] sm:$0xff]
    %v1893 = vld [vmem:[#allocation8 + $0xd0] sm:$0xff]
    %v1894 = vld [vmem:[#allocation8 + $0xd8] sm:$0xff]
    %v1895 = vld [vmem:[#allocation8 + $0xe0] sm:$0xff]
    %v1896 = vld [vmem:[#allocation8 + $0xe8] sm:$0xff]
    %v1897 = vld [vmem:[#allocation8 + $0xf0] sm:$0xff]
    %v1898 = vld [vmem:[#allocation8 + $0xf8] sm:$0xff]
    %v1899 = vld [vmem:[%s4] sm:$0x3]
    %v1901 = vperm.slane %v1899, 0
    %v1902 = vperm.slane %v1899, 1
    %v1937 = vunpack.c.l.b16 %v1867
    %v1938 = vunpack.c.h.b16 %v1867
    %v1939 = vunpack.c.l.b16 %v1868
    %v1940 = vunpack.c.h.b16 %v1868
    %v1941 = vunpack.c.l.b16 %v1869
    %v1942 = vunpack.c.h.b16 %v1869
    %v1943 = vunpack.c.l.b16 %v1870
    %v1944 = vunpack.c.h.b16 %v1870
    %v1945 = vunpack.c.l.b16 %v1871
    %v1946 = vunpack.c.h.b16 %v1871
    %v1947 = vunpack.c.l.b16 %v1872
    %v1948 = vunpack.c.h.b16 %v1872
    %v1949 = vunpack.c.l.b16 %v1873
    %v1950 = vunpack.c.h.b16 %v1873
    %v1951 = vunpack.c.l.b16 %v1874
    %v1952 = vunpack.c.h.b16 %v1874
    %v1953 = vunpack.c.l.b16 %v1875
    %v1954 = vunpack.c.h.b16 %v1875
    %v1955 = vunpack.c.l.b16 %v1876
    %v1956 = vunpack.c.h.b16 %v1876
    %v1957 = vunpack.c.l.b16 %v1877
    %v1958 = vunpack.c.h.b16 %v1877
    %v1959 = vunpack.c.l.b16 %v1878
    %v1960 = vunpack.c.h.b16 %v1878
    %v1961 = vunpack.c.l.b16 %v1879
    %v1962 = vunpack.c.h.b16 %v1879
    %v1963 = vunpack.c.l.b16 %v1880
    %v1964 = vunpack.c.h.b16 %v1880
    %v1965 = vunpack.c.l.b16 %v1881
    %v1966 = vunpack.c.h.b16 %v1881
    %v1967 = vunpack.c.l.b16 %v1882
    %v1968 = vunpack.c.h.b16 %v1882
    %v1969 = vunpack.c.l.b16 %v1883
    %v1970 = vunpack.c.h.b16 %v1883
    %v1971 = vunpack.c.l.b16 %v1884
    %v1972 = vunpack.c.h.b16 %v1884
    %v1973 = vunpack.c.l.b16 %v1885
    %v1974 = vunpack.c.h.b16 %v1885
    %v1975 = vunpack.c.l.b16 %v1886
    %v1976 = vunpack.c.h.b16 %v1886
    %v1977 = vunpack.c.l.b16 %v1887
    %v1978 = vunpack.c.h.b16 %v1887
    %v1979 = vunpack.c.l.b16 %v1888
    %v1980 = vunpack.c.h.b16 %v1888
    %v1981 = vunpack.c.l.b16 %v1889
    %v1982 = vunpack.c.h.b16 %v1889
    %v1983 = vunpack.c.l.b16 %v1890
    %v1984 = vunpack.c.h.b16 %v1890
    %v1985 = vunpack.c.l.b16 %v1891
    %v1986 = vunpack.c.h.b16 %v1891
    %v1987 = vunpack.c.l.b16 %v1892
    %v1988 = vunpack.c.h.b16 %v1892
    %v1989 = vunpack.c.l.b16 %v1893
    %v1990 = vunpack.c.h.b16 %v1893
    %v1991 = vunpack.c.l.b16 %v1894
    %v1992 = vunpack.c.h.b16 %v1894
    %v1993 = vunpack.c.l.b16 %v1895
    %v1994 = vunpack.c.h.b16 %v1895
    %v1995 = vunpack.c.l.b16 %v1896
    %v1996 = vunpack.c.h.b16 %v1896
    %v1997 = vunpack.c.l.b16 %v1897
    %v1998 = vunpack.c.h.b16 %v1897
    %v1999 = vunpack.c.l.b16 %v1898
    %v2000 = vunpack.c.h.b16 %v1898
    %v2001 = vpack.c.b16 %v1939, %v1937
    %v2002 = vpack.c.b16 %v1940, %v1938
    %v2003 = vpack.c.b16 %v1943, %v1941
    %v2004 = vpack.c.b16 %v1944, %v1942
    %v2005 = vpack.c.b16 %v1947, %v1945
    %v2006 = vpack.c.b16 %v1948, %v1946
    %v2007 = vpack.c.b16 %v1951, %v1949
    %v2008 = vpack.c.b16 %v1952, %v1950
    %v2009 = vpack.c.b16 %v1955, %v1953
    %v2010 = vpack.c.b16 %v1956, %v1954
    %v2011 = vpack.c.b16 %v1959, %v1957
    %v2012 = vpack.c.b16 %v1960, %v1958
    %v2013 = vpack.c.b16 %v1963, %v1961
    %v2014 = vpack.c.b16 %v1964, %v1962
    %v2015 = vpack.c.b16 %v1967, %v1965
    %v2016 = vpack.c.b16 %v1968, %v1966
    %v2017 = vpack.c.b16 %v1971, %v1969
    %v2018 = vpack.c.b16 %v1972, %v1970
    %v2019 = vpack.c.b16 %v1975, %v1973
    %v2020 = vpack.c.b16 %v1976, %v1974
    %v2021 = vpack.c.b16 %v1979, %v1977
    %v2022 = vpack.c.b16 %v1980, %v1978
    %v2023 = vpack.c.b16 %v1983, %v1981
    %v2024 = vpack.c.b16 %v1984, %v1982
    %v2025 = vpack.c.b16 %v1987, %v1985
    %v2026 = vpack.c.b16 %v1988, %v1986
    %v2027 = vpack.c.b16 %v1991, %v1989
    %v2028 = vpack.c.b16 %v1992, %v1990
    %v2029 = vpack.c.b16 %v1995, %v1993
    %v2030 = vpack.c.b16 %v1996, %v1994
    %v2031 = vpack.c.b16 %v1999, %v1997
    %v2032 = vpack.c.b16 %v2000, %v1998
    %2065 = vmatpush.bf16.msra.mxu0 %v2015
    %2066 = vmatpush.bf16.msra.mxu0 %v2013
    %2067 = vmatpush.bf16.msra.mxu0 %v2011
    %2068 = vmatpush.bf16.msra.mxu0 %v2009
    %2069 = vmatpush.bf16.msra.mxu0 %v2007
    %2070 = vmatpush.bf16.msra.mxu0 %v2005
    %2071 = vmatpush.bf16.msra.mxu0 %v2003
    %2072 = vmatpush.bf16.msra.mxu0 %v2001
    %2073 = vmatmul.bf16.gmra.mxu0 %v1851
    %v2074 = vpop.f32.mrf.mxu0
    %v2075 = vadd.f32 %v1901, %v2074
    %v2076 = vpop.f32.mrf.mxu0
    %v2077 = vadd.f32 %v1901, %v2076
    %2078 = vmatmul.bf16.gmra.mxu0 %v1853
    %v2079 = vpop.f32.mrf.mxu0
    %v2080 = vadd.f32 %v1901, %v2079
    %v2081 = vpop.f32.mrf.mxu0
    %v2082 = vadd.f32 %v1901, %v2081
    %2083 = vmatmul.bf16.gmra.mxu0 %v1855
    %v2084 = vpop.f32.mrf.mxu0
    %v2085 = vadd.f32 %v1901, %v2084
    %v2086 = vpop.f32.mrf.mxu0
    %v2087 = vadd.f32 %v1901, %v2086
    %2088 = vmatmul.bf16.gmra.mxu0 %v1857
    %v2089 = vpop.f32.mrf.mxu0
    %v2090 = vadd.f32 %v1901, %v2089
    %v2091 = vpop.f32.mrf.mxu0
    %v2092 = vadd.f32 %v1901, %v2091
    %2093 = vmatmul.bf16.gmra.mxu0 %v1859
    %v2094 = vpop.f32.mrf.mxu0
    %v2095 = vadd.f32 %v1901, %v2094
    %v2096 = vpop.f32.mrf.mxu0
    %v2097 = vadd.f32 %v1901, %v2096
    %2098 = vmatmul.bf16.gmra.mxu0 %v1861
    %v2099 = vpop.f32.mrf.mxu0
    %v2100 = vadd.f32 %v1901, %v2099
    %v2101 = vpop.f32.mrf.mxu0
    %v2102 = vadd.f32 %v1901, %v2101
    %2103 = vmatmul.bf16.gmra.mxu0 %v1863
    %v2104 = vpop.f32.mrf.mxu0
    %v2105 = vadd.f32 %v1901, %v2104
    %v2106 = vpop.f32.mrf.mxu0
    %v2107 = vadd.f32 %v1901, %v2106
    %2108 = vmatmul.bf16.gmra.mxu0 %v1865
    %v2109 = vpop.f32.mrf.mxu0
    %v2110 = vadd.f32 %v1901, %v2109
    %v2111 = vpop.f32.mrf.mxu0
    %v2112 = vadd.f32 %v1901, %v2111
    %2113 = vdwg.mxu0
    %2114 = vmatpush.bf16.msra.mxu0 %v2031
    %2115 = vmatpush.bf16.msra.mxu0 %v2029
    %2116 = vmatpush.bf16.msra.mxu0 %v2027
    %2117 = vmatpush.bf16.msra.mxu0 %v2025
    %2118 = vmatpush.bf16.msra.mxu0 %v2023
    %2119 = vmatpush.bf16.msra.mxu0 %v2021
    %2120 = vmatpush.bf16.msra.mxu0 %v2019
    %2121 = vmatpush.bf16.msra.mxu0 %v2017
    %2122 = vmatmul.bf16.gmra.mxu0 %v1852
    %v2123 = vpop.f32.mrf.mxu0
    %v2124 = vadd.f32 %v2075, %v2123
    %v2125 = vpop.f32.mrf.mxu0
    %v2126 = vadd.f32 %v2077, %v2125
    %2127 = vmatmul.bf16.gmra.mxu0 %v1854
    %v2128 = vpop.f32.mrf.mxu0
    %v2129 = vadd.f32 %v2080, %v2128
    %v2130 = vpop.f32.mrf.mxu0
    %v2131 = vadd.f32 %v2082, %v2130
    %2132 = vmatmul.bf16.gmra.mxu0 %v1856
    %v2133 = vpop.f32.mrf.mxu0
    %v2134 = vadd.f32 %v2085, %v2133
    %v2135 = vpop.f32.mrf.mxu0
    %v2136 = vadd.f32 %v2087, %v2135
    %2137 = vmatmul.bf16.gmra.mxu0 %v1858
    %v2138 = vpop.f32.mrf.mxu0
    %v2139 = vadd.f32 %v2090, %v2138
    %v2140 = vpop.f32.mrf.mxu0
    %v2141 = vadd.f32 %v2092, %v2140
    %2142 = vmatmul.bf16.gmra.mxu0 %v1860
    %v2143 = vpop.f32.mrf.mxu0
    %v2144 = vadd.f32 %v2095, %v2143
    %v2145 = vpop.f32.mrf.mxu0
    %v2146 = vadd.f32 %v2097, %v2145
    %2147 = vmatmul.bf16.gmra.mxu0 %v1862
    %v2148 = vpop.f32.mrf.mxu0
    %v2149 = vadd.f32 %v2100, %v2148
    %v2150 = vpop.f32.mrf.mxu0
    %v2151 = vadd.f32 %v2102, %v2150
    %2152 = vmatmul.bf16.gmra.mxu0 %v1864
    %v2153 = vpop.f32.mrf.mxu0
    %v2154 = vadd.f32 %v2105, %v2153
    %v2155 = vpop.f32.mrf.mxu0
    %v2156 = vadd.f32 %v2107, %v2155
    %2157 = vmatmul.bf16.gmra.mxu0 %v1866
    %v2158 = vpop.f32.mrf.mxu0
    %v2159 = vadd.f32 %v2110, %v2158
    %v2160 = vpop.f32.mrf.mxu0
    %v2161 = vadd.f32 %v2112, %v2160
    %2162 = vdwg.mxu0
    %2163 = vmatpush.bf16.msra.mxu0 %v2016
    %2164 = vmatpush.bf16.msra.mxu0 %v2014
    %2165 = vmatpush.bf16.msra.mxu0 %v2012
    %2166 = vmatpush.bf16.msra.mxu0 %v2010
    %2167 = vmatpush.bf16.msra.mxu0 %v2008
    %2168 = vmatpush.bf16.msra.mxu0 %v2006
    %2169 = vmatpush.bf16.msra.mxu0 %v2004
    %2170 = vmatpush.bf16.msra.mxu0 %v2002
    %2171 = vmatmul.bf16.gmra.mxu0 %v1851
    %v2172 = vpop.f32.mrf.mxu0
    %v2173 = vadd.f32 %v1902, %v2172
    %v2174 = vpop.f32.mrf.mxu0
    %v2175 = vadd.f32 %v1902, %v2174
    %2176 = vmatmul.bf16.gmra.mxu0 %v1853
    %v2177 = vpop.f32.mrf.mxu0
    %v2178 = vadd.f32 %v1902, %v2177
    %v2179 = vpop.f32.mrf.mxu0
    %v2180 = vadd.f32 %v1902, %v2179
    %2181 = vmatmul.bf16.gmra.mxu0 %v1855
    %v2182 = vpop.f32.mrf.mxu0
    %v2183 = vadd.f32 %v1902, %v2182
    %v2184 = vpop.f32.mrf.mxu0
    %v2185 = vadd.f32 %v1902, %v2184
    %2186 = vmatmul.bf16.gmra.mxu0 %v1857
    %v2187 = vpop.f32.mrf.mxu0
    %v2188 = vadd.f32 %v1902, %v2187
    %v2189 = vpop.f32.mrf.mxu0
    %v2190 = vadd.f32 %v1902, %v2189
    %2191 = vmatmul.bf16.gmra.mxu0 %v1859
    %v2192 = vpop.f32.mrf.mxu0
    %v2193 = vadd.f32 %v1902, %v2192
    %v2194 = vpop.f32.mrf.mxu0
    %v2195 = vadd.f32 %v1902, %v2194
    %2196 = vmatmul.bf16.gmra.mxu0 %v1861
    %v2197 = vpop.f32.mrf.mxu0
    %v2198 = vadd.f32 %v1902, %v2197
    %v2199 = vpop.f32.mrf.mxu0
    %v2200 = vadd.f32 %v1902, %v2199
    %2201 = vmatmul.bf16.gmra.mxu0 %v1863
    %v2202 = vpop.f32.mrf.mxu0
    %v2203 = vadd.f32 %v1902, %v2202
    %v2204 = vpop.f32.mrf.mxu0
    %v2205 = vadd.f32 %v1902, %v2204
    %2206 = vmatmul.bf16.gmra.mxu0 %v1865
    %v2207 = vpop.f32.mrf.mxu0
    %v2208 = vadd.f32 %v1902, %v2207
    %v2209 = vpop.f32.mrf.mxu0
    %v2210 = vadd.f32 %v1902, %v2209
    %2211 = vdwg.mxu0
    %2212 = vmatpush.bf16.msra.mxu0 %v2032
    %2213 = vmatpush.bf16.msra.mxu0 %v2030
    %2214 = vmatpush.bf16.msra.mxu0 %v2028
    %2215 = vmatpush.bf16.msra.mxu0 %v2026
    %2216 = vmatpush.bf16.msra.mxu0 %v2024
    %2217 = vmatpush.bf16.msra.mxu0 %v2022
    %2218 = vmatpush.bf16.msra.mxu0 %v2020
    %2219 = vmatpush.bf16.msra.mxu0 %v2018
    %2220 = vmatmul.bf16.gmra.mxu0 %v1852
    %v2221 = vpop.f32.mrf.mxu0
    %v2222 = vadd.f32 %v2173, %v2221
    %v2223 = vpop.f32.mrf.mxu0
    %v2224 = vadd.f32 %v2175, %v2223
    %2225 = vmatmul.bf16.gmra.mxu0 %v1854
    %v2226 = vpop.f32.mrf.mxu0
    %v2227 = vadd.f32 %v2178, %v2226
    %v2228 = vpop.f32.mrf.mxu0
    %v2229 = vadd.f32 %v2180, %v2228
    %2230 = vmatmul.bf16.gmra.mxu0 %v1856
    %v2231 = vpop.f32.mrf.mxu0
    %v2232 = vadd.f32 %v2183, %v2231
    %v2233 = vpop.f32.mrf.mxu0
    %v2234 = vadd.f32 %v2185, %v2233
    %2235 = vmatmul.bf16.gmra.mxu0 %v1858
    %v2236 = vpop.f32.mrf.mxu0
    %v2237 = vadd.f32 %v2188, %v2236
    %v2238 = vpop.f32.mrf.mxu0
    %v2239 = vadd.f32 %v2190, %v2238
    %2240 = vmatmul.bf16.gmra.mxu0 %v1860
    %v2241 = vpop.f32.mrf.mxu0
    %v2242 = vadd.f32 %v2193, %v2241
    %v2243 = vpop.f32.mrf.mxu0
    %v2244 = vadd.f32 %v2195, %v2243
    %2245 = vmatmul.bf16.gmra.mxu0 %v1862
    %v2246 = vpop.f32.mrf.mxu0
    %v2247 = vadd.f32 %v2198, %v2246
    %v2248 = vpop.f32.mrf.mxu0
    %v2249 = vadd.f32 %v2200, %v2248
    %2250 = vmatmul.bf16.gmra.mxu0 %v1864
    %v2251 = vpop.f32.mrf.mxu0
    %v2252 = vadd.f32 %v2203, %v2251
    %v2253 = vpop.f32.mrf.mxu0
    %v2254 = vadd.f32 %v2205, %v2253
    %2255 = vmatmul.bf16.gmra.mxu0 %v1866
    %v2256 = vpop.f32.mrf.mxu0
    %v2257 = vadd.f32 %v2208, %v2256
    %v2258 = vpop.f32.mrf.mxu0
    %v2259 = vadd.f32 %v2210, %v2258
    %2260 = vdwg.mxu0
    %v2261 = vmax.f32 %v2124, 0.0
    %v2262 = vmax.f32 %v2222, 0.0
    %v2263 = vmax.f32 %v2126, 0.0
    %v2264 = vmax.f32 %v2224, 0.0
    %v2265 = vmax.f32 %v2129, 0.0
    %v2266 = vmax.f32 %v2227, 0.0
    %v2267 = vmax.f32 %v2131, 0.0
    %v2268 = vmax.f32 %v2229, 0.0
    %v2269 = vmax.f32 %v2134, 0.0
    %v2270 = vmax.f32 %v2232, 0.0
    %v2271 = vmax.f32 %v2136, 0.0
    %v2272 = vmax.f32 %v2234, 0.0
    %v2273 = vmax.f32 %v2139, 0.0
    %v2274 = vmax.f32 %v2237, 0.0
    %v2275 = vmax.f32 %v2141, 0.0
    %v2276 = vmax.f32 %v2239, 0.0
    %v2277 = vmax.f32 %v2144, 0.0
    %v2278 = vmax.f32 %v2242, 0.0
    %v2279 = vmax.f32 %v2146, 0.0
    %v2280 = vmax.f32 %v2244, 0.0
    %v2281 = vmax.f32 %v2149, 0.0
    %v2282 = vmax.f32 %v2247, 0.0
    %v2283 = vmax.f32 %v2151, 0.0
    %v2284 = vmax.f32 %v2249, 0.0
    %v2285 = vmax.f32 %v2154, 0.0
    %v2286 = vmax.f32 %v2252, 0.0
    %v2287 = vmax.f32 %v2156, 0.0
    %v2288 = vmax.f32 %v2254, 0.0
    %v2289 = vmax.f32 %v2159, 0.0
    %v2290 = vmax.f32 %v2257, 0.0
    %v2291 = vmax.f32 %v2161, 0.0
    %v2292 = vmax.f32 %v2259, 0.0
    %v2293 = vpack.c.bf16 %v2263, %v2261
    %v2294 = vpack.c.bf16 %v2264, %v2262
    %v2295 = vpack.c.bf16 %v2267, %v2265
    %v2296 = vpack.c.bf16 %v2268, %v2266
    %v2297 = vpack.c.bf16 %v2271, %v2269
    %v2298 = vpack.c.bf16 %v2272, %v2270
    %v2299 = vpack.c.bf16 %v2275, %v2273
    %v2300 = vpack.c.bf16 %v2276, %v2274
    %v2301 = vpack.c.bf16 %v2279, %v2277
    %v2302 = vpack.c.bf16 %v2280, %v2278
    %v2303 = vpack.c.bf16 %v2283, %v2281
    %v2304 = vpack.c.bf16 %v2284, %v2282
    %v2305 = vpack.c.bf16 %v2287, %v2285
    %v2306 = vpack.c.bf16 %v2288, %v2286
    %v2307 = vpack.c.bf16 %v2291, %v2289
    %v2308 = vpack.c.bf16 %v2292, %v2290
    %v2309 = vld [vmem:[#allocation10] sm:$0xf]
    %v2310 = vld [vmem:[#allocation10 + $0x4] sm:$0xf]
    %v2311 = vld [vmem:[#allocation10 + $0x8] sm:$0xf]
    %v2312 = vld [vmem:[#allocation10 + $0xc] sm:$0xf]
    %v2313 = vld [vmem:[#allocation10 + $0x10] sm:$0xf]
    %v2314 = vld [vmem:[#allocation10 + $0x14] sm:$0xf]
    %v2315 = vld [vmem:[#allocation10 + $0x18] sm:$0xf]
    %v2316 = vld [vmem:[#allocation10 + $0x1c] sm:$0xf]
    %v2317 = vld [vmem:[#allocation10 + $0x20] sm:$0xf]
    %v2318 = vld [vmem:[#allocation10 + $0x24] sm:$0xf]
    %v2319 = vld [vmem:[#allocation10 + $0x28] sm:$0xf]
    %v2320 = vld [vmem:[#allocation10 + $0x2c] sm:$0xf]
    %v2321 = vld [vmem:[#allocation10 + $0x30] sm:$0xf]
    %v2322 = vld [vmem:[#allocation10 + $0x34] sm:$0xf]
    %v2323 = vld [vmem:[#allocation10 + $0x38] sm:$0xf]
    %v2324 = vld [vmem:[#allocation10 + $0x3c] sm:$0xf]
    %v2325 = vld [vmem:[#allocation10 + $0x40] sm:$0xf]
    %v2326 = vld [vmem:[#allocation10 + $0x44] sm:$0xf]
    %v2327 = vld [vmem:[#allocation10 + $0x48] sm:$0xf]
    %v2328 = vld [vmem:[#allocation10 + $0x4c] sm:$0xf]
    %v2329 = vld [vmem:[#allocation10 + $0x50] sm:$0xf]
    %v2330 = vld [vmem:[#allocation10 + $0x54] sm:$0xf]
    %v2331 = vld [vmem:[#allocation10 + $0x58] sm:$0xf]
    %v2332 = vld [vmem:[#allocation10 + $0x5c] sm:$0xf]
    %v2333 = vld [vmem:[#allocation10 + $0x60] sm:$0xf]
    %v2334 = vld [vmem:[#allocation10 + $0x64] sm:$0xf]
    %v2335 = vld [vmem:[#allocation10 + $0x68] sm:$0xf]
    %v2336 = vld [vmem:[#allocation10 + $0x6c] sm:$0xf]
    %v2337 = vld [vmem:[#allocation10 + $0x70] sm:$0xf]
    %v2338 = vld [vmem:[#allocation10 + $0x74] sm:$0xf]
    %v2339 = vld [vmem:[#allocation10 + $0x78] sm:$0xf]
    %v2340 = vld [vmem:[#allocation10 + $0x7c] sm:$0xf]
    %v2341 = vld [vmem:[%s6] sm:$0x1]
    %v2343 = vperm.slane %v2341, 0
    %v2377 = vunpack.c.l.b16 %v2309
    %v2378 = vunpack.c.l.b16 %v2310
    %v2379 = vunpack.c.l.b16 %v2311
    %v2380 = vunpack.c.l.b16 %v2312
    %v2381 = vunpack.c.l.b16 %v2313
    %v2382 = vunpack.c.l.b16 %v2314
    %v2383 = vunpack.c.l.b16 %v2315
    %v2384 = vunpack.c.l.b16 %v2316
    %v2385 = vunpack.c.l.b16 %v2317
    %v2386 = vunpack.c.l.b16 %v2318
    %v2387 = vunpack.c.l.b16 %v2319
    %v2388 = vunpack.c.l.b16 %v2320
    %v2389 = vunpack.c.l.b16 %v2321
    %v2390 = vunpack.c.l.b16 %v2322
    %v2391 = vunpack.c.l.b16 %v2323
    %v2392 = vunpack.c.l.b16 %v2324
    %v2393 = vunpack.c.l.b16 %v2325
    %v2394 = vunpack.c.l.b16 %v2326
    %v2395 = vunpack.c.l.b16 %v2327
    %v2396 = vunpack.c.l.b16 %v2328
    %v2397 = vunpack.c.l.b16 %v2329
    %v2398 = vunpack.c.l.b16 %v2330
    %v2399 = vunpack.c.l.b16 %v2331
    %v2400 = vunpack.c.l.b16 %v2332
    %v2401 = vunpack.c.l.b16 %v2333
    %v2402 = vunpack.c.l.b16 %v2334
    %v2403 = vunpack.c.l.b16 %v2335
    %v2404 = vunpack.c.l.b16 %v2336
    %v2405 = vunpack.c.l.b16 %v2337
    %v2406 = vunpack.c.l.b16 %v2338
    %v2407 = vunpack.c.l.b16 %v2339
    %v2408 = vunpack.c.l.b16 %v2340
    %v2409 = vpack.c.b16 %v2378, %v2377
    %v2410 = vpack.c.b16 %v2380, %v2379
    %v2411 = vpack.c.b16 %v2382, %v2381
    %v2412 = vpack.c.b16 %v2384, %v2383
    %v2413 = vpack.c.b16 %v2386, %v2385
    %v2414 = vpack.c.b16 %v2388, %v2387
    %v2415 = vpack.c.b16 %v2390, %v2389
    %v2416 = vpack.c.b16 %v2392, %v2391
    %v2417 = vpack.c.b16 %v2394, %v2393
    %v2418 = vpack.c.b16 %v2396, %v2395
    %v2419 = vpack.c.b16 %v2398, %v2397
    %v2420 = vpack.c.b16 %v2400, %v2399
    %v2421 = vpack.c.b16 %v2402, %v2401
    %v2422 = vpack.c.b16 %v2404, %v2403
    %v2423 = vpack.c.b16 %v2406, %v2405
    %v2424 = vpack.c.b16 %v2408, %v2407
    %2441 = vmatpush.bf16.msra.mxu0 %v2416
    %2442 = vmatpush.bf16.msra.mxu0 %v2415
    %2443 = vmatpush.bf16.msra.mxu0 %v2414
    %2444 = vmatpush.bf16.msra.mxu0 %v2413
    %2445 = vmatpush.bf16.msra.mxu0 %v2412
    %2446 = vmatpush.bf16.msra.mxu0 %v2411
    %2447 = vmatpush.bf16.msra.mxu0 %v2410
    %2448 = vmatpush.bf16.msra.mxu0 %v2409
    %2449 = vmatmul.bf16.gmra.mxu0 %v2293
    %v2450 = vpop.f32.mrf.mxu0
    %v2451 = vadd.f32 %v2343, %v2450
    %v2452 = vpop.f32.mrf.mxu0
    %v2453 = vadd.f32 %v2343, %v2452
    %2454 = vmatmul.bf16.gmra.mxu0 %v2295
    %v2455 = vpop.f32.mrf.mxu0
    %v2456 = vadd.f32 %v2343, %v2455
    %v2457 = vpop.f32.mrf.mxu0
    %v2458 = vadd.f32 %v2343, %v2457
    %2459 = vmatmul.bf16.gmra.mxu0 %v2297
    %v2460 = vpop.f32.mrf.mxu0
    %v2461 = vadd.f32 %v2343, %v2460
    %v2462 = vpop.f32.mrf.mxu0
    %v2463 = vadd.f32 %v2343, %v2462
    %2464 = vmatmul.bf16.gmra.mxu0 %v2299
    %v2465 = vpop.f32.mrf.mxu0
    %v2466 = vadd.f32 %v2343, %v2465
    %v2467 = vpop.f32.mrf.mxu0
    %v2468 = vadd.f32 %v2343, %v2467
    %2469 = vmatmul.bf16.gmra.mxu0 %v2301
    %v2470 = vpop.f32.mrf.mxu0
    %v2471 = vadd.f32 %v2343, %v2470
    %v2472 = vpop.f32.mrf.mxu0
    %v2473 = vadd.f32 %v2343, %v2472
    %2474 = vmatmul.bf16.gmra.mxu0 %v2303
    %v2475 = vpop.f32.mrf.mxu0
    %v2476 = vadd.f32 %v2343, %v2475
    %v2477 = vpop.f32.mrf.mxu0
    %v2478 = vadd.f32 %v2343, %v2477
    %2479 = vmatmul.bf16.gmra.mxu0 %v2305
    %v2480 = vpop.f32.mrf.mxu0
    %v2481 = vadd.f32 %v2343, %v2480
    %v2482 = vpop.f32.mrf.mxu0
    %v2483 = vadd.f32 %v2343, %v2482
    %2484 = vmatmul.bf16.gmra.mxu0 %v2307
    %v2485 = vpop.f32.mrf.mxu0
    %v2486 = vadd.f32 %v2343, %v2485
    %v2487 = vpop.f32.mrf.mxu0
    %v2488 = vadd.f32 %v2343, %v2487
    %2489 = vdwg.mxu0
    %2490 = vmatpush.bf16.msra.mxu0 %v2424
    %2491 = vmatpush.bf16.msra.mxu0 %v2423
    %2492 = vmatpush.bf16.msra.mxu0 %v2422
    %2493 = vmatpush.bf16.msra.mxu0 %v2421
    %2494 = vmatpush.bf16.msra.mxu0 %v2420
    %2495 = vmatpush.bf16.msra.mxu0 %v2419
    %2496 = vmatpush.bf16.msra.mxu0 %v2418
    %2497 = vmatpush.bf16.msra.mxu0 %v2417
    %2498 = vmatmul.bf16.gmra.mxu0 %v2294
    %v2499 = vpop.f32.mrf.mxu0
    %v2500 = vadd.f32 %v2451, %v2499
    %v2501 = vpop.f32.mrf.mxu0
    %v2502 = vadd.f32 %v2453, %v2501
    %2503 = vmatmul.bf16.gmra.mxu0 %v2296
    %v2504 = vpop.f32.mrf.mxu0
    %v2505 = vadd.f32 %v2456, %v2504
    %v2506 = vpop.f32.mrf.mxu0
    %v2507 = vadd.f32 %v2458, %v2506
    %2508 = vmatmul.bf16.gmra.mxu0 %v2298
    %v2509 = vpop.f32.mrf.mxu0
    %v2510 = vadd.f32 %v2461, %v2509
    %v2511 = vpop.f32.mrf.mxu0
    %v2512 = vadd.f32 %v2463, %v2511
    %2513 = vmatmul.bf16.gmra.mxu0 %v2300
    %v2514 = vpop.f32.mrf.mxu0
    %v2515 = vadd.f32 %v2466, %v2514
    %v2516 = vpop.f32.mrf.mxu0
    %v2517 = vadd.f32 %v2468, %v2516
    %2518 = vmatmul.bf16.gmra.mxu0 %v2302
    %v2519 = vpop.f32.mrf.mxu0
    %v2520 = vadd.f32 %v2471, %v2519
    %v2521 = vpop.f32.mrf.mxu0
    %v2522 = vadd.f32 %v2473, %v2521
    %2523 = vmatmul.bf16.gmra.mxu0 %v2304
    %v2524 = vpop.f32.mrf.mxu0
    %v2525 = vadd.f32 %v2476, %v2524
    %v2526 = vpop.f32.mrf.mxu0
    %v2527 = vadd.f32 %v2478, %v2526
    %2528 = vmatmul.bf16.gmra.mxu0 %v2306
    %v2529 = vpop.f32.mrf.mxu0
    %v2530 = vadd.f32 %v2481, %v2529
    %v2531 = vpop.f32.mrf.mxu0
    %v2532 = vadd.f32 %v2483, %v2531
    %2533 = vmatmul.bf16.gmra.mxu0 %v2308
    %v2534 = vpop.f32.mrf.mxu0
    %v2535 = vadd.f32 %v2486, %v2534
    %v2536 = vpop.f32.mrf.mxu0
    %v2537 = vadd.f32 %v2488, %v2536
    %2538 = vdwg.mxu0
    %v2539 = vmax.f32 %v2500, 0.0
    %v2540 = vmax.f32 %v2502, 0.0
    %v2541 = vmax.f32 %v2505, 0.0
    %v2542 = vmax.f32 %v2507, 0.0
    %v2543 = vmax.f32 %v2510, 0.0
    %v2544 = vmax.f32 %v2512, 0.0
    %v2545 = vmax.f32 %v2515, 0.0
    %v2546 = vmax.f32 %v2517, 0.0
    %v2547 = vmax.f32 %v2520, 0.0
    %v2548 = vmax.f32 %v2522, 0.0
    %v2549 = vmax.f32 %v2525, 0.0
    %v2550 = vmax.f32 %v2527, 0.0
    %v2551 = vmax.f32 %v2530, 0.0
    %v2552 = vmax.f32 %v2532, 0.0
    %v2553 = vmax.f32 %v2535, 0.0
    %v2554 = vmax.f32 %v2537, 0.0
    %2555 = vst [vmem:[#allocation11] sm:$0xff] %v2539
    %2556 = vst [vmem:[#allocation11 + $0x8] sm:$0xff] %v2540
    %2557 = vst [vmem:[#allocation11 + $0x10] sm:$0xff] %v2541
    %2558 = vst [vmem:[#allocation11 + $0x18] sm:$0xff] %v2542
    %2559 = vst [vmem:[#allocation11 + $0x20] sm:$0xff] %v2543
    %2560 = vst [vmem:[#allocation11 + $0x28] sm:$0xff] %v2544
    %2561 = vst [vmem:[#allocation11 + $0x30] sm:$0xff] %v2545
    %2562 = vst [vmem:[#allocation11 + $0x38] sm:$0xff] %v2546
    %2563 = vst [vmem:[#allocation11 + $0x40] sm:$0xff] %v2547
    %2564 = vst [vmem:[#allocation11 + $0x48] sm:$0xff] %v2548
    %2565 = vst [vmem:[#allocation11 + $0x50] sm:$0xff] %v2549
    %2566 = vst [vmem:[#allocation11 + $0x58] sm:$0xff] %v2550
    %2567 = vst [vmem:[#allocation11 + $0x60] sm:$0xff] %v2551
    %2568 = vst [vmem:[#allocation11 + $0x68] sm:$0xff] %v2552
    %2569 = vst [vmem:[#allocation11 + $0x70] sm:$0xff] %v2553
    %2570 = vst [vmem:[#allocation11 + $0x78] sm:$0xff] %v2554
    // Predicated region
    $region50: #{tpu_custom_call.1} parent=1 // pred_check
      _
    $region51: #{tpu_custom_call.1} parent=1 // pred_check_branch
      %2572 = sbr.rel (0) target = $region53
    $region52: #{tpu_custom_call.1} parent=1 // pred_region
      %2574 = vsyncadd [#allocation4], 0
      %s2575 = sshll.u32 [#allocation11], 4
      %s2576 = int_to_ptr.vmem [resolvable:$true] %s2575
      %s2577 = sshll.u32 %s7, 4
      %s2578 = int_to_ptr.hbm [resolvable:$true] %s2577
      %2583 = dma.vmem_to_hbm [thread:$0]  %s2576, 2048, %s2578, [#allocation4], 128, 128, 8
    $region53: #{tpu_custom_call.1} parent=1 // pred_fallthru
      _
    // Predicated region
    $region54: #{tpu_custom_call.1} parent=1 // pred_check
      _
    $region55: #{tpu_custom_call.1} parent=1 // pred_check_branch
      %2585 = sbr.rel (0) target = $region57
    $region56: #{tpu_custom_call.1} parent=1 // pred_region
      %2587 = dma.done [#allocation4], 2048
    $region57: #{tpu_custom_call.1} parent=1 // pred_fallthru
      _
    %2588 = vsyncpa [#allocation3], 1
    %2589 = vsyncpa [#allocation6], 1
    %2590 = vsyncpa [#allocation9], 1
    %2591 = vsyncpa [#allocation4], 1

</llo_original>
